<compile_context>
chip_gen: v7x
topology: tpu7x:2x2x1
jax: 0.10.0
libtpu: 0.0.40
codegen_flags: <defaults>
</compile_context>

<pallas_src>
import functools

import jax
import jax.numpy as jnp
import numpy as np
from jax.experimental import pallas as pl
from jax.experimental.pallas import tpu as pltpu


def _round_up(v, m):
    return -(-v // m) * m


# --------------------------- fused Pallas kernel -----------------------------

def _block_kernel(xp_ref, tt_ref, oh_ref, w1_ref, w2_ref, w3_ref, wtm_ref,
                  prm_ref, out_ref, pad_ref, *, wp, ncols, n_valid, eps):
    """Whole Block forward on VMEM-resident, lane-dense (C, B*pixels) data.

    Padded images are flattened row-major (row width `wp`) and laid back to
    back along the lane axis; every conv tap is one contiguous lane slice at a
    static offset ky*wp + kx, so each conv collapses to a single MXU matmul.
    """
    wp1 = wp + 1
    taps3 = [ky * wp + kx for ky in range(3) for kx in range(3)]
    taps4 = [ky * wp + kx for ky in range(4) for kx in range(4)]

    # packed per-channel params: [c1_b, t_b, bn1_g, bn1_b, c2_b, bn2_g, bn2_b, c3_b]
    prm = prm_ref[...]
    b1, bt = prm[:, 0:1], prm[:, 1:2]
    g1, be1 = prm[:, 2:3], prm[:, 3:4]
    b2, g2, be2 = prm[:, 4:5], prm[:, 5:6], prm[:, 6:7]
    b3 = prm[:, 7:8]

    oh = oh_ref[...]                                   # (B, ncols) masked one-hot
    mask = jnp.sum(oh, axis=0, keepdims=True)          # (1, ncols) validity mask

    # zero only the scratch border lanes the masked writebacks never cover
    nch = pad_ref.shape[0]
    wtot = pad_ref.shape[1]
    pad_ref[:, :wp1] = jnp.zeros((nch, wp1), jnp.float32)
    pad_ref[:, wp1 + ncols:wtot] = jnp.zeros((nch, wtot - wp1 - ncols), jnp.float32)

    # time embedding: relu(W_t @ t^T + b_t) -> (Cout, B); per-image broadcast
    # (already masked) via the one-hot rows.
    temb = jnp.maximum(
        jnp.dot(wtm_ref[...], tt_ref[...], preferred_element_type=jnp.float32) + bt,
        0.0)
    temb_slab = temb[:, 0:1] * oh[0:1, :]
    for b in range(1, oh.shape[0]):
        temb_slab = temb_slab + temb[:, b:b + 1] * oh[b:b + 1, :]

    inv_n = 1.0 / n_valid

    def conv(src_ref, w, b, taps, relu):
        """One conv for all images: im2col concat + a single MXU dot."""
        cols = jnp.concatenate([src_ref[:, t:t + ncols] for t in taps], axis=0)
        y = jnp.dot(w, cols, preferred_element_type=jnp.float32) + b
        return jnp.maximum(y, 0.0) if relu else y

    def bn_affine(h, g, be):
        """Training-mode BN over (batch, valid pixels): one-pass sum/sum-sq."""
        hm = h * mask
        s = jnp.sum(hm, axis=1, keepdims=True)
        sq = jnp.sum(hm * hm, axis=1, keepdims=True)
        mean = s * inv_n
        var = jnp.maximum(sq * inv_n - mean * mean, 0.0)   # clamp cancellation
        scale = jax.lax.rsqrt(var + eps) * g
        return scale, be - mean * scale

    # ---- conv1 + ReLU -> BN1 + time emb -> padded scratch --------------------
    h1 = conv(xp_ref, w1_ref[...], b1, taps3, relu=True)
    sc1, sh1 = bn_affine(h1, g1, be1)
    pad_ref[:, wp1:wp1 + ncols] = (h1 * sc1 + sh1) * mask + temb_slab

    # ---- conv2 + ReLU -> BN2 -> same scratch (h2 materialized before store) --
    h2 = conv(pad_ref, w2_ref[...], b2, taps3, relu=True)
    sc2, sh2 = bn_affine(h2, g2, be2)
    pad_ref[:, wp1:wp1 + ncols] = (h2 * sc2 + sh2) * mask

    # ---- transform: 4x4 conv at stride 1 (wrapper decimates rows/cols by 2) --
    out_ref[...] = conv(pad_ref, w3_ref[...], b3, taps4, relu=False)


# --------------------------- wrapper ------------------------------------------

def block_forward(x_nchw, t, p):
    """Pallas implementation of Block.forward (up=False).  NCHW in, NCHW out."""
    B, Cin, H, W = x_nchw.shape
    Cout = p["conv1_w"].shape[0]
    Wp, Hp = W + 2, H + 3                 # 1 top / 2 bottom / 1 left / 1 right
    Npad = Hp * Wp
    n1 = H * Wp                           # 3x3 slab length per image
    nt = (H - 1) * Wp                     # 4x4 stride-1 slab length per image
    ncols = _round_up((B - 1) * Npad + n1, 128)     # lane-dense conv/out width
    Wtot = _round_up(3 * Wp + 3 + ncols, 128)       # padded buffer lane width
    cin_p = _round_up(Cin, 16)            # bf16 sublane-packing multiple

    # input: per-image zero pad -> channel-major merged lane axis -> bf16
    x = x_nchw.astype(jnp.float32)
    xp = jnp.pad(x, ((0, 0), (0, cin_p - Cin), (1, 2), (1, 1)))    # (B,cin_p,Hp,Wp)
    xp = jnp.transpose(xp, (1, 0, 2, 3)).reshape(cin_p, B * Npad)
    xp = jnp.pad(xp, ((0, 0), (0, Wtot - B * Npad))).astype(jnp.bfloat16)

    def conv_w(w, ci_pad):                # OIHW -> (Cout, kH*kW*ci_pad)
        o, i, kh, kw = w.shape
        wt = jnp.transpose(w, (0, 2, 3, 1)).astype(jnp.float32)
        wt = jnp.pad(wt, ((0, 0), (0, 0), (0, 0), (0, ci_pad - i)))
        return wt.reshape(o, kh * kw * ci_pad)

    w1 = conv_w(p["conv1_w"], cin_p).astype(jnp.bfloat16)
    w2 = conv_w(p["conv2_w"], Cout)
    w3 = conv_w(p["transform_w"], Cout)

    # single packed (Cout, 8) per-channel parameter array (one DMA)
    prm = jnp.stack([p["conv1_b"], p["time_b"], p["bn1_g"], p["bn1_b"],
                     p["conv2_b"], p["bn2_g"], p["bn2_b"], p["transform_b"]],
                    axis=1).astype(jnp.float32)

    # masked per-image one-hot: oh[b, j] = 1 iff lane j is a valid pixel of
    # image b (row-sum gives the validity mask).  Static-shape constant.
    j = np.arange(ncols)
    img = j // Npad
    jj = j - img * Npad
    valid = (jj < n1) & ((jj % Wp) < W)
    oh = jnp.asarray(((img[None, :] == np.arange(B)[:, None]) & valid[None, :])
                     .astype(np.float32))

    tt = jnp.transpose(t.astype(jnp.float32))          # (tdim, B)

    out = pl.pallas_call(
        functools.partial(_block_kernel, wp=Wp, ncols=ncols,
                          n_valid=float(B * H * W), eps=1e-5),
        out_shape=jax.ShapeDtypeStruct((Cout, ncols), jnp.float32),
        scratch_shapes=[pltpu.VMEM((Cout, Wtot), jnp.float32)],
    )(xp, tt, oh, w1, w2, w3, p["time_w"].astype(jnp.float32), prm)

    # per-image slab -> keep even rows / even cols of the stride-1 transform
    slabs = jnp.stack([out[:, b * Npad:b * Npad + nt] for b in range(B)], axis=0)
    return slabs.reshape(B, Cout, H - 1, Wp)[:, :, ::2, 0:W - 1:2]


# --------------------------- pure-JAX reference -------------------------------

def ref_block_forward(x, t, p):
    hp = jax.lax.Precision.HIGHEST

    def conv(z, w, b, stride, pad):
        y = jax.lax.conv_general_dilated(
            z, w, window_strides=(stride, stride),
            padding=((pad, pad), (pad, pad)),
            dimension_numbers=("NCHW", "OIHW", "NCHW"),
            precision=hp)
        return y + b[None, :, None, None]

    def bn(h, g, be, eps=1e-5):
        m = jnp.mean(h, axis=(0, 2, 3), keepdims=True)
        v = jnp.mean((h - m) ** 2, axis=(0, 2, 3), keepdims=True)
        return ((h - m) * jax.lax.rsqrt(v + eps) * g[None, :, None, None]
                + be[None, :, None, None])

    h = bn(jax.nn.relu(conv(x, p["conv1_w"], p["conv1_b"], 1, 1)),
           p["bn1_g"], p["bn1_b"])
    temb = jax.nn.relu(jnp.dot(t, p["time_w"].T, precision=hp) + p["time_b"])
    h = h + temb[:, :, None, None]
    h = bn(jax.nn.relu(conv(h, p["conv2_w"], p["conv2_b"], 1, 1)),
           p["bn2_g"], p["bn2_b"])
    return conv(h, p["transform_w"], p["transform_b"], 2, 1)


# --------------------------- main ---------------------------------------------

if __name__ == "__main__":
    in_ch, out_ch, tdim = 4, 8, 32
    B, H, W = 2, 16, 16

    key = jax.random.PRNGKey(0)
    ks = jax.random.split(key, 10)
    params = {
        "conv1_w": 0.2 * jax.random.normal(ks[0], (out_ch, in_ch, 3, 3), jnp.float32),
        "conv1_b": 0.1 * jax.random.normal(ks[1], (out_ch,), jnp.float32),
        "time_w": 0.2 * jax.random.normal(ks[2], (out_ch, tdim), jnp.float32),
        "time_b": 0.1 * jax.random.normal(ks[3], (out_ch,), jnp.float32),
        "conv2_w": 0.2 * jax.random.normal(ks[4], (out_ch, out_ch, 3, 3), jnp.float32),
        "conv2_b": 0.1 * jax.random.normal(ks[5], (out_ch,), jnp.float32),
        "transform_w": 0.2 * jax.random.normal(ks[6], (out_ch, out_ch, 4, 4), jnp.float32),
        "transform_b": 0.1 * jax.random.normal(ks[7], (out_ch,), jnp.float32),
        "bn1_g": jnp.ones((out_ch,), jnp.float32),
        "bn1_b": jnp.zeros((out_ch,), jnp.float32),
        "bn2_g": jnp.ones((out_ch,), jnp.float32),
        "bn2_b": jnp.zeros((out_ch,), jnp.float32),
    }
    x = jax.random.normal(ks[8], (B, in_ch, H, W), jnp.float32)
    t = jax.random.normal(ks[9], (B, tdim), jnp.float32)

    y = jax.block_until_ready(jax.jit(block_forward)(x, t, params))
    assert y.shape == (B, out_ch, H // 2, W // 2), y.shape

    y_ref = jax.block_until_ready(jax.jit(ref_block_forward)(x, t, params))
    # Kernel matmuls run with bf16 inputs / single-pass bf16 MXU precision and
    # f32 accumulation (per perf review); reference is full f32.  Tolerance is
    # sized for bf16 input rounding over K<=144 and 3 stacked layers; any
    # structural bug (wrong tap offset / mask / BN) gives O(1) errors and trips.
    np.testing.assert_allclose(np.asarray(y), np.asarray(y_ref),
                               rtol=5e-2, atol=1e-1)
    print("KERNEL_OK")
</pallas_src>

<mosaic_0001>
module attributes {stable_mosaic.version = 11 : i64} {
  func.func @_block_kernel(%arg0: memref<16x768xbf16, #tpu.memory_space<vmem>>, %arg1: memref<32x2xf32, #tpu.memory_space<vmem>>, %arg2: memref<2x640xf32, #tpu.memory_space<vmem>>, %arg3: memref<8x144xbf16, #tpu.memory_space<vmem>>, %arg4: memref<8x72xf32, #tpu.memory_space<vmem>>, %arg5: memref<8x128xf32, #tpu.memory_space<vmem>>, %arg6: memref<8x32xf32, #tpu.memory_space<vmem>>, %arg7: memref<8x8xf32, #tpu.memory_space<vmem>>, %arg8: memref<8x640xf32, #tpu.memory_space<vmem>>, %arg9: memref<8x768xf32, #tpu.memory_space<vmem>>) attributes {dimension_semantics = [], scalar_prefetch = 0 : i64, scratch_operands = 1 : i64, tpu.core_type = #tpu.core_type<tc>} {
    %c0 = arith.constant 0 : index
    %c0_0 = arith.constant 0 : index
    %0 = vector.load %arg7[%c0, %c0_0] : memref<8x8xf32, #tpu.memory_space<vmem>>, vector<8x8xf32>
    %1 = vector.extract_strided_slice %0 {offsets = [0, 0], sizes = [8, 1], strides = [1, 1]} : vector<8x8xf32> to vector<8x1xf32>
    %2 = vector.extract_strided_slice %0 {offsets = [0, 1], sizes = [8, 1], strides = [1, 1]} : vector<8x8xf32> to vector<8x1xf32>
    %3 = vector.extract_strided_slice %0 {offsets = [0, 2], sizes = [8, 1], strides = [1, 1]} : vector<8x8xf32> to vector<8x1xf32>
    %4 = vector.extract_strided_slice %0 {offsets = [0, 3], sizes = [8, 1], strides = [1, 1]} : vector<8x8xf32> to vector<8x1xf32>
    %5 = vector.extract_strided_slice %0 {offsets = [0, 4], sizes = [8, 1], strides = [1, 1]} : vector<8x8xf32> to vector<8x1xf32>
    %6 = vector.extract_strided_slice %0 {offsets = [0, 5], sizes = [8, 1], strides = [1, 1]} : vector<8x8xf32> to vector<8x1xf32>
    %7 = vector.extract_strided_slice %0 {offsets = [0, 6], sizes = [8, 1], strides = [1, 1]} : vector<8x8xf32> to vector<8x1xf32>
    %8 = vector.extract_strided_slice %0 {offsets = [0, 7], sizes = [8, 1], strides = [1, 1]} : vector<8x8xf32> to vector<8x1xf32>
    %c0_1 = arith.constant 0 : index
    %c0_2 = arith.constant 0 : index
    %9 = vector.load %arg2[%c0_1, %c0_2] : memref<2x640xf32, #tpu.memory_space<vmem>>, vector<2x640xf32>
    %cst = arith.constant dense<0.000000e+00> : vector<640xf32>
    %10 = vector.multi_reduction <add>, %9, %cst [0] : vector<2x640xf32> to vector<640xf32>
    %11 = vector.shape_cast %10 : vector<640xf32> to vector<1x640xf32>
    %cst_3 = arith.constant 0.000000e+00 : f32
    %12 = vector.broadcast %cst_3 : f32 to vector<8x19xf32>
    %c0_4 = arith.constant 0 : index
    %c0_5 = arith.constant 0 : index
    %13 = vector.load %arg9[%c0_4, %c0_5] : memref<8x768xf32, #tpu.memory_space<vmem>>, vector<8x19xf32>
    tpu.vector_store %arg9[%c0_4, %c0_5], %12 {strides = array<i32>} : memref<8x768xf32, #tpu.memory_space<vmem>>, vector<8x19xf32>,
    %cst_6 = arith.constant 0.000000e+00 : f32
    %14 = vector.broadcast %cst_6 : f32 to vector<8x109xf32>
    %c0_7 = arith.constant 0 : index
    %c659 = arith.constant 659 : index
    %15 = vector.load %arg9[%c0_7, %c659] : memref<8x768xf32, #tpu.memory_space<vmem>>, vector<8x109xf32>
    tpu.vector_store %arg9[%c0_7, %c659], %14 {strides = array<i32>} : memref<8x768xf32, #tpu.memory_space<vmem>>, vector<8x109xf32>,
    %c0_8 = arith.constant 0 : index
    %c0_9 = arith.constant 0 : index
    %16 = vector.load %arg6[%c0_8, %c0_9] : memref<8x32xf32, #tpu.memory_space<vmem>>, vector<8x32xf32>
    %c0_10 = arith.constant 0 : index
    %c0_11 = arith.constant 0 : index
    %17 = vector.load %arg1[%c0_10, %c0_11] : memref<32x2xf32, #tpu.memory_space<vmem>>, vector<32x2xf32>
    %cst_12 = arith.constant dense<0.000000e+00> : vector<8x2xf32>
    %18 = tpu.matmul %16, %17, %cst_12 {dimension_numbers = #tpu.dot_dimension_numbers<[1], [0], [0], [1], [0, 0, 1, 1], [], []>} : vector<8x32xf32>, vector<32x2xf32>, vector<8x2xf32> -> vector<8x2xf32>
    %19 = vector.broadcast %2 : vector<8x1xf32> to vector<8x2xf32>
    %20 = arith.addf %18, %19 : vector<8x2xf32>
    %cst_13 = arith.constant 0.000000e+00 : f32
    %21 = vector.broadcast %cst_13 : f32 to vector<8x2xf32>
    %22 = arith.maximumf %20, %21 : vector<8x2xf32>
    %23 = vector.extract_strided_slice %22 {offsets = [0, 0], sizes = [8, 1], strides = [1, 1]} : vector<8x2xf32> to vector<8x1xf32>
    %24 = vector.extract_strided_slice %9 {offsets = [0, 0], sizes = [1, 640], strides = [1, 1]} : vector<2x640xf32> to vector<1x640xf32>
    %25 = vector.broadcast %23 : vector<8x1xf32> to vector<8x640xf32>
    %26 = vector.broadcast %24 : vector<1x640xf32> to vector<8x640xf32>
    %27 = arith.mulf %25, %26 : vector<8x640xf32>
    %28 = vector.extract_strided_slice %22 {offsets = [0, 1], sizes = [8, 1], strides = [1, 1]} : vector<8x2xf32> to vector<8x1xf32>
    %29 = vector.extract_strided_slice %9 {offsets = [1, 0], sizes = [1, 640], strides = [1, 1]} : vector<2x640xf32> to vector<1x640xf32>
    %30 = vector.broadcast %28 : vector<8x1xf32> to vector<8x640xf32>
    %31 = vector.broadcast %29 : vector<1x640xf32> to vector<8x640xf32>
    %32 = arith.mulf %30, %31 : vector<8x640xf32>
    %33 = arith.addf %27, %32 : vector<8x640xf32>
    %c0_14 = arith.constant 0 : index
    %c0_15 = arith.constant 0 : index
    %34 = vector.load %arg3[%c0_14, %c0_15] : memref<8x144xbf16, #tpu.memory_space<vmem>>, vector<8x144xbf16>
    %c0_16 = arith.constant 0 : index
    %c0_17 = arith.constant 0 : index
    %35 = vector.load %arg0[%c0_16, %c0_17] : memref<16x768xbf16, #tpu.memory_space<vmem>>, vector<16x640xbf16>
    %c0_18 = arith.constant 0 : index
    %c1 = arith.constant 1 : index
    %36 = vector.load %arg0[%c0_18, %c1] : memref<16x768xbf16, #tpu.memory_space<vmem>>, vector<16x640xbf16>
    %c0_19 = arith.constant 0 : index
    %c2 = arith.constant 2 : index
    %37 = vector.load %arg0[%c0_19, %c2] : memref<16x768xbf16, #tpu.memory_space<vmem>>, vector<16x640xbf16>
    %c0_20 = arith.constant 0 : index
    %c18 = arith.constant 18 : index
    %38 = vector.load %arg0[%c0_20, %c18] : memref<16x768xbf16, #tpu.memory_space<vmem>>, vector<16x640xbf16>
    %c0_21 = arith.constant 0 : index
    %c19 = arith.constant 19 : index
    %39 = vector.load %arg0[%c0_21, %c19] : memref<16x768xbf16, #tpu.memory_space<vmem>>, vector<16x640xbf16>
    %c0_22 = arith.constant 0 : index
    %c20 = arith.constant 20 : index
    %40 = vector.load %arg0[%c0_22, %c20] : memref<16x768xbf16, #tpu.memory_space<vmem>>, vector<16x640xbf16>
    %c0_23 = arith.constant 0 : index
    %c36 = arith.constant 36 : index
    %41 = vector.load %arg0[%c0_23, %c36] : memref<16x768xbf16, #tpu.memory_space<vmem>>, vector<16x640xbf16>
    %c0_24 = arith.constant 0 : index
    %c37 = arith.constant 37 : index
    %42 = vector.load %arg0[%c0_24, %c37] : memref<16x768xbf16, #tpu.memory_space<vmem>>, vector<16x640xbf16>
    %c0_25 = arith.constant 0 : index
    %c38 = arith.constant 38 : index
    %43 = vector.load %arg0[%c0_25, %c38] : memref<16x768xbf16, #tpu.memory_space<vmem>>, vector<16x640xbf16>
    %44 = tpu.concatenate %35, %36, %37, %38, %39, %40, %41, %42, %43 in 0 : vector<16x640xbf16>, vector<16x640xbf16>, vector<16x640xbf16>, vector<16x640xbf16>, vector<16x640xbf16>, vector<16x640xbf16>, vector<16x640xbf16>, vector<16x640xbf16>, vector<16x640xbf16> -> vector<144x640xbf16>
    %cst_26 = arith.constant dense<0.000000e+00> : vector<8x640xf32>
    %45 = tpu.matmul %34, %44, %cst_26 {dimension_numbers = #tpu.dot_dimension_numbers<[1], [0], [0], [1], [0, 0, 1, 1], [], []>} : vector<8x144xbf16>, vector<144x640xbf16>, vector<8x640xf32> -> vector<8x640xf32>
    %46 = vector.broadcast %1 : vector<8x1xf32> to vector<8x640xf32>
    %47 = arith.addf %45, %46 : vector<8x640xf32>
    %cst_27 = arith.constant 0.000000e+00 : f32
    %48 = vector.broadcast %cst_27 : f32 to vector<8x640xf32>
    %49 = arith.maximumf %47, %48 : vector<8x640xf32>
    %50 = vector.broadcast %11 : vector<1x640xf32> to vector<8x640xf32>
    %51 = arith.mulf %49, %50 : vector<8x640xf32>
    %cst_28 = arith.constant dense<0.000000e+00> : vector<8xf32>
    %52 = vector.multi_reduction <add>, %51, %cst_28 [1] : vector<8x640xf32> to vector<8xf32>
    %53 = vector.shape_cast %52 : vector<8xf32> to vector<8x1xf32>
    %54 = arith.mulf %51, %51 : vector<8x640xf32>
    %cst_29 = arith.constant dense<0.000000e+00> : vector<8xf32>
    %55 = vector.multi_reduction <add>, %54, %cst_29 [1] : vector<8x640xf32> to vector<8xf32>
    %56 = vector.shape_cast %55 : vector<8xf32> to vector<8x1xf32>
    %cst_30 = arith.constant 0.001953125 : f32
    %57 = vector.broadcast %cst_30 : f32 to vector<8x1xf32>
    %58 = arith.mulf %53, %57 : vector<8x1xf32>
    %cst_31 = arith.constant 0.001953125 : f32
    %59 = vector.broadcast %cst_31 : f32 to vector<8x1xf32>
    %60 = arith.mulf %56, %59 : vector<8x1xf32>
    %61 = arith.mulf %58, %58 : vector<8x1xf32>
    %62 = arith.subf %60, %61 : vector<8x1xf32>
    %cst_32 = arith.constant 0.000000e+00 : f32
    %63 = vector.broadcast %cst_32 : f32 to vector<8x1xf32>
    %64 = arith.maximumf %62, %63 : vector<8x1xf32>
    %cst_33 = arith.constant 9.99999974E-6 : f32
    %65 = vector.broadcast %cst_33 : f32 to vector<8x1xf32>
    %66 = arith.addf %64, %65 : vector<8x1xf32>
    %67 = math.rsqrt %66 : vector<8x1xf32>
    %68 = arith.mulf %67, %3 : vector<8x1xf32>
    %69 = arith.mulf %58, %68 : vector<8x1xf32>
    %70 = arith.subf %4, %69 : vector<8x1xf32>
    %71 = vector.broadcast %68 : vector<8x1xf32> to vector<8x640xf32>
    %72 = arith.mulf %49, %71 : vector<8x640xf32>
    %73 = vector.broadcast %70 : vector<8x1xf32> to vector<8x640xf32>
    %74 = arith.addf %72, %73 : vector<8x640xf32>
    %75 = vector.broadcast %11 : vector<1x640xf32> to vector<8x640xf32>
    %76 = arith.mulf %74, %75 : vector<8x640xf32>
    %77 = arith.addf %76, %33 : vector<8x640xf32>
    %c0_34 = arith.constant 0 : index
    %c19_35 = arith.constant 19 : index
    %78 = vector.load %arg9[%c0_34, %c19_35] : memref<8x768xf32, #tpu.memory_space<vmem>>, vector<8x640xf32>
    tpu.vector_store %arg9[%c0_34, %c19_35], %77 {strides = array<i32>} : memref<8x768xf32, #tpu.memory_space<vmem>>, vector<8x640xf32>,
    %c0_36 = arith.constant 0 : index
    %c0_37 = arith.constant 0 : index
    %79 = vector.load %arg4[%c0_36, %c0_37] : memref<8x72xf32, #tpu.memory_space<vmem>>, vector<8x72xf32>
    %c0_38 = arith.constant 0 : index
    %c0_39 = arith.constant 0 : index
    %80 = vector.load %arg9[%c0_38, %c0_39] : memref<8x768xf32, #tpu.memory_space<vmem>>, vector<8x640xf32>
    %c0_40 = arith.constant 0 : index
    %c1_41 = arith.constant 1 : index
    %81 = vector.load %arg9[%c0_40, %c1_41] : memref<8x768xf32, #tpu.memory_space<vmem>>, vector<8x640xf32>
    %c0_42 = arith.constant 0 : index
    %c2_43 = arith.constant 2 : index
    %82 = vector.load %arg9[%c0_42, %c2_43] : memref<8x768xf32, #tpu.memory_space<vmem>>, vector<8x640xf32>
    %c0_44 = arith.constant 0 : index
    %c18_45 = arith.constant 18 : index
    %83 = vector.load %arg9[%c0_44, %c18_45] : memref<8x768xf32, #tpu.memory_space<vmem>>, vector<8x640xf32>
    %c0_46 = arith.constant 0 : index
    %c19_47 = arith.constant 19 : index
    %84 = vector.load %arg9[%c0_46, %c19_47] : memref<8x768xf32, #tpu.memory_space<vmem>>, vector<8x640xf32>
    %c0_48 = arith.constant 0 : index
    %c20_49 = arith.constant 20 : index
    %85 = vector.load %arg9[%c0_48, %c20_49] : memref<8x768xf32, #tpu.memory_space<vmem>>, vector<8x640xf32>
    %c0_50 = arith.constant 0 : index
    %c36_51 = arith.constant 36 : index
    %86 = vector.load %arg9[%c0_50, %c36_51] : memref<8x768xf32, #tpu.memory_space<vmem>>, vector<8x640xf32>
    %c0_52 = arith.constant 0 : index
    %c37_53 = arith.constant 37 : index
    %87 = vector.load %arg9[%c0_52, %c37_53] : memref<8x768xf32, #tpu.memory_space<vmem>>, vector<8x640xf32>
    %c0_54 = arith.constant 0 : index
    %c38_55 = arith.constant 38 : index
    %88 = vector.load %arg9[%c0_54, %c38_55] : memref<8x768xf32, #tpu.memory_space<vmem>>, vector<8x640xf32>
    %89 = tpu.concatenate %80, %81, %82, %83, %84, %85, %86, %87, %88 in 0 : vector<8x640xf32>, vector<8x640xf32>, vector<8x640xf32>, vector<8x640xf32>, vector<8x640xf32>, vector<8x640xf32>, vector<8x640xf32>, vector<8x640xf32>, vector<8x640xf32> -> vector<72x640xf32>
    %cst_56 = arith.constant dense<0.000000e+00> : vector<8x640xf32>
    %90 = tpu.matmul %79, %89, %cst_56 {dimension_numbers = #tpu.dot_dimension_numbers<[1], [0], [0], [1], [0, 0, 1, 1], [], []>} : vector<8x72xf32>, vector<72x640xf32>, vector<8x640xf32> -> vector<8x640xf32>
    %91 = vector.broadcast %5 : vector<8x1xf32> to vector<8x640xf32>
    %92 = arith.addf %90, %91 : vector<8x640xf32>
    %cst_57 = arith.constant 0.000000e+00 : f32
    %93 = vector.broadcast %cst_57 : f32 to vector<8x640xf32>
    %94 = arith.maximumf %92, %93 : vector<8x640xf32>
    %95 = vector.broadcast %11 : vector<1x640xf32> to vector<8x640xf32>
    %96 = arith.mulf %94, %95 : vector<8x640xf32>
    %cst_58 = arith.constant dense<0.000000e+00> : vector<8xf32>
    %97 = vector.multi_reduction <add>, %96, %cst_58 [1] : vector<8x640xf32> to vector<8xf32>
    %98 = vector.shape_cast %97 : vector<8xf32> to vector<8x1xf32>
    %99 = arith.mulf %96, %96 : vector<8x640xf32>
    %cst_59 = arith.constant dense<0.000000e+00> : vector<8xf32>
    %100 = vector.multi_reduction <add>, %99, %cst_59 [1] : vector<8x640xf32> to vector<8xf32>
    %101 = vector.shape_cast %100 : vector<8xf32> to vector<8x1xf32>
    %cst_60 = arith.constant 0.001953125 : f32
    %102 = vector.broadcast %cst_60 : f32 to vector<8x1xf32>
    %103 = arith.mulf %98, %102 : vector<8x1xf32>
    %cst_61 = arith.constant 0.001953125 : f32
    %104 = vector.broadcast %cst_61 : f32 to vector<8x1xf32>
    %105 = arith.mulf %101, %104 : vector<8x1xf32>
    %106 = arith.mulf %103, %103 : vector<8x1xf32>
    %107 = arith.subf %105, %106 : vector<8x1xf32>
    %cst_62 = arith.constant 0.000000e+00 : f32
    %108 = vector.broadcast %cst_62 : f32 to vector<8x1xf32>
    %109 = arith.maximumf %107, %108 : vector<8x1xf32>
    %cst_63 = arith.constant 9.99999974E-6 : f32
    %110 = vector.broadcast %cst_63 : f32 to vector<8x1xf32>
    %111 = arith.addf %109, %110 : vector<8x1xf32>
    %112 = math.rsqrt %111 : vector<8x1xf32>
    %113 = arith.mulf %112, %6 : vector<8x1xf32>
    %114 = arith.mulf %103, %113 : vector<8x1xf32>
    %115 = arith.subf %7, %114 : vector<8x1xf32>
    %116 = vector.broadcast %113 : vector<8x1xf32> to vector<8x640xf32>
    %117 = arith.mulf %94, %116 : vector<8x640xf32>
    %118 = vector.broadcast %115 : vector<8x1xf32> to vector<8x640xf32>
    %119 = arith.addf %117, %118 : vector<8x640xf32>
    %120 = vector.broadcast %11 : vector<1x640xf32> to vector<8x640xf32>
    %121 = arith.mulf %119, %120 : vector<8x640xf32>
    %c0_64 = arith.constant 0 : index
    %c19_65 = arith.constant 19 : index
    %122 = vector.load %arg9[%c0_64, %c19_65] : memref<8x768xf32, #tpu.memory_space<vmem>>, vector<8x640xf32>
    tpu.vector_store %arg9[%c0_64, %c19_65], %121 {strides = array<i32>} : memref<8x768xf32, #tpu.memory_space<vmem>>, vector<8x640xf32>,
    %c0_66 = arith.constant 0 : index
    %c0_67 = arith.constant 0 : index
    %123 = vector.load %arg5[%c0_66, %c0_67] : memref<8x128xf32, #tpu.memory_space<vmem>>, vector<8x128xf32>
    %c0_68 = arith.constant 0 : index
    %c0_69 = arith.constant 0 : index
    %124 = vector.load %arg9[%c0_68, %c0_69] : memref<8x768xf32, #tpu.memory_space<vmem>>, vector<8x640xf32>
    %c0_70 = arith.constant 0 : index
    %c1_71 = arith.constant 1 : index
    %125 = vector.load %arg9[%c0_70, %c1_71] : memref<8x768xf32, #tpu.memory_space<vmem>>, vector<8x640xf32>
    %c0_72 = arith.constant 0 : index
    %c2_73 = arith.constant 2 : index
    %126 = vector.load %arg9[%c0_72, %c2_73] : memref<8x768xf32, #tpu.memory_space<vmem>>, vector<8x640xf32>
    %c0_74 = arith.constant 0 : index
    %c3 = arith.constant 3 : index
    %127 = vector.load %arg9[%c0_74, %c3] : memref<8x768xf32, #tpu.memory_space<vmem>>, vector<8x640xf32>
    %c0_75 = arith.constant 0 : index
    %c18_76 = arith.constant 18 : index
    %128 = vector.load %arg9[%c0_75, %c18_76] : memref<8x768xf32, #tpu.memory_space<vmem>>, vector<8x640xf32>
    %c0_77 = arith.constant 0 : index
    %c19_78 = arith.constant 19 : index
    %129 = vector.load %arg9[%c0_77, %c19_78] : memref<8x768xf32, #tpu.memory_space<vmem>>, vector<8x640xf32>
    %c0_79 = arith.constant 0 : index
    %c20_80 = arith.constant 20 : index
    %130 = vector.load %arg9[%c0_79, %c20_80] : memref<8x768xf32, #tpu.memory_space<vmem>>, vector<8x640xf32>
    %c0_81 = arith.constant 0 : index
    %c21 = arith.constant 21 : index
    %131 = vector.load %arg9[%c0_81, %c21] : memref<8x768xf32, #tpu.memory_space<vmem>>, vector<8x640xf32>
    %c0_82 = arith.constant 0 : index
    %c36_83 = arith.constant 36 : index
    %132 = vector.load %arg9[%c0_82, %c36_83] : memref<8x768xf32, #tpu.memory_space<vmem>>, vector<8x640xf32>
    %c0_84 = arith.constant 0 : index
    %c37_85 = arith.constant 37 : index
    %133 = vector.load %arg9[%c0_84, %c37_85] : memref<8x768xf32, #tpu.memory_space<vmem>>, vector<8x640xf32>
    %c0_86 = arith.constant 0 : index
    %c38_87 = arith.constant 38 : index
    %134 = vector.load %arg9[%c0_86, %c38_87] : memref<8x768xf32, #tpu.memory_space<vmem>>, vector<8x640xf32>
    %c0_88 = arith.constant 0 : index
    %c39 = arith.constant 39 : index
    %135 = vector.load %arg9[%c0_88, %c39] : memref<8x768xf32, #tpu.memory_space<vmem>>, vector<8x640xf32>
    %c0_89 = arith.constant 0 : index
    %c54 = arith.constant 54 : index
    %136 = vector.load %arg9[%c0_89, %c54] : memref<8x768xf32, #tpu.memory_space<vmem>>, vector<8x640xf32>
    %c0_90 = arith.constant 0 : index
    %c55 = arith.constant 55 : index
    %137 = vector.load %arg9[%c0_90, %c55] : memref<8x768xf32, #tpu.memory_space<vmem>>, vector<8x640xf32>
    %c0_91 = arith.constant 0 : index
    %c56 = arith.constant 56 : index
    %138 = vector.load %arg9[%c0_91, %c56] : memref<8x768xf32, #tpu.memory_space<vmem>>, vector<8x640xf32>
    %c0_92 = arith.constant 0 : index
    %c57 = arith.constant 57 : index
    %139 = vector.load %arg9[%c0_92, %c57] : memref<8x768xf32, #tpu.memory_space<vmem>>, vector<8x640xf32>
    %140 = tpu.concatenate %124, %125, %126, %127, %128, %129, %130, %131, %132, %133, %134, %135, %136, %137, %138, %139 in 0 : vector<8x640xf32>, vector<8x640xf32>, vector<8x640xf32>, vector<8x640xf32>, vector<8x640xf32>, vector<8x640xf32>, vector<8x640xf32>, vector<8x640xf32>, vector<8x640xf32>, vector<8x640xf32>, vector<8x640xf32>, vector<8x640xf32>, vector<8x640xf32>, vector<8x640xf32>, vector<8x640xf32>, vector<8x640xf32> -> vector<128x640xf32>
    %cst_93 = arith.constant dense<0.000000e+00> : vector<8x640xf32>
    %141 = tpu.matmul %123, %140, %cst_93 {dimension_numbers = #tpu.dot_dimension_numbers<[1], [0], [0], [1], [0, 0, 1, 1], [], []>} : vector<8x128xf32>, vector<128x640xf32>, vector<8x640xf32> -> vector<8x640xf32>
    %142 = vector.broadcast %8 : vector<8x1xf32> to vector<8x640xf32>
    %143 = arith.addf %141, %142 : vector<8x640xf32>
    %c0_94 = arith.constant 0 : index
    %c0_95 = arith.constant 0 : index
    %144 = vector.load %arg8[%c0_94, %c0_95] : memref<8x640xf32, #tpu.memory_space<vmem>>, vector<8x640xf32>
    tpu.vector_store %arg8[%c0_94, %c0_95], %143 {strides = array<i32>} : memref<8x640xf32, #tpu.memory_space<vmem>>, vector<8x640xf32>,
    return
  }
}

</mosaic_0001>

<llo_original>
// kernel: block_forward.1
$region0: #{block_forward.1}
  #allocation0 [shape = 'u32[]', space=smem, size = 0x4, offset = 0x4, fixed_abs, tag = 'smem constant byte address 0x4 - core index']
  #allocation1 [shape = 'u32[144,128]{1,0:T(1,128)}', space=vmem, size = 0x12000, scoped, tag = 'internal scratch']
  #allocation2 [shape = 'f32[8,768]{1,0:T(8,128)}', space=vmem, size = 0x6000, scoped, tag = 'scratch operand']
  %s0 = inlined_call_operand.vmem [shape: bf16[16,768], index: 0, kind: input, shape index: {}]
  %s1 = inlined_call_operand.vmem [shape: f32[32,2], index: 1, kind: input, shape index: {}]
  %s2 = inlined_call_operand.vmem [shape: f32[2,640], index: 2, kind: input, shape index: {}]
  %s3 = inlined_call_operand.vmem [shape: bf16[8,144], index: 3, kind: input, shape index: {}]
  %s4 = inlined_call_operand.vmem [shape: f32[8,72], index: 4, kind: input, shape index: {}]
  %s5 = inlined_call_operand.vmem [shape: f32[8,128], index: 5, kind: input, shape index: {}]
  %s6 = inlined_call_operand.vmem [shape: f32[8,32], index: 6, kind: input, shape index: {}]
  %s7 = inlined_call_operand.vmem [shape: f32[8,8], index: 7, kind: input, shape index: {}]
  %s8 = inlined_call_operand.vmem [shape: f32[8,640], index: 8, kind: output, shape index: {}]
  %s9 = sld [smem:[#allocation0]]
  $region42: #{block_forward.1} parent=0
    _
  %s11 = ssub.s32 1, %s9
  %s12 = scalar_select 0, %s11, %s9
  // Predicated region
  $region2: #{block_forward.1} parent=0 // pred_check
    _
  $region3: #{block_forward.1} parent=0 // pred_check_branch
    %14 = sbr.rel (0) target = $region5
  $region4: #{block_forward.1} parent=0 // pred_region
    _
  $region5: #{block_forward.1} parent=0 // pred_fallthru
    _
  // Predicated region
  $region6: #{block_forward.1} parent=0 // pred_check
    _
  $region7: #{block_forward.1} parent=0 // pred_check_branch
    %16 = sbr.rel (0) target = $region9
  $region8: #{block_forward.1} parent=0 // pred_region
    _
  $region9: #{block_forward.1} parent=0 // pred_fallthru
    _
  // Predicated region
  $region10: #{block_forward.1} parent=0 // pred_check
    _
  $region11: #{block_forward.1} parent=0 // pred_check_branch
    %18 = sbr.rel (0) target = $region13
  $region12: #{block_forward.1} parent=0 // pred_region
    _
  $region13: #{block_forward.1} parent=0 // pred_fallthru
    _
  // Predicated region
  $region14: #{block_forward.1} parent=0 // pred_check
    _
  $region15: #{block_forward.1} parent=0 // pred_check_branch
    %20 = sbr.rel (0) target = $region17
  $region16: #{block_forward.1} parent=0 // pred_region
    _
  $region17: #{block_forward.1} parent=0 // pred_fallthru
    _
  // Predicated region
  $region18: #{block_forward.1} parent=0 // pred_check
    _
  $region19: #{block_forward.1} parent=0 // pred_check_branch
    %22 = sbr.rel (0) target = $region21
  $region20: #{block_forward.1} parent=0 // pred_region
    _
  $region21: #{block_forward.1} parent=0 // pred_fallthru
    _
  // Predicated region
  $region22: #{block_forward.1} parent=0 // pred_check
    _
  $region23: #{block_forward.1} parent=0 // pred_check_branch
    %24 = sbr.rel (0) target = $region25
  $region24: #{block_forward.1} parent=0 // pred_region
    _
  $region25: #{block_forward.1} parent=0 // pred_fallthru
    _
  // Predicated region
  $region26: #{block_forward.1} parent=0 // pred_check
    _
  $region27: #{block_forward.1} parent=0 // pred_check_branch
    %26 = sbr.rel (0) target = $region29
  $region28: #{block_forward.1} parent=0 // pred_region
    _
  $region29: #{block_forward.1} parent=0 // pred_fallthru
    _
  // Predicated region
  $region30: #{block_forward.1} parent=0 // pred_check
    _
  $region31: #{block_forward.1} parent=0 // pred_check_branch
    %28 = sbr.rel (0) target = $region33
  $region32: #{block_forward.1} parent=0 // pred_region
    _
  $region33: #{block_forward.1} parent=0 // pred_fallthru
    _
  %v30 = vld [vmem:[%s7] sm:$0xff]
  %v31 = vld [vmem:[%s2] sm:$0xff]
  %v32 = vld [vmem:[%s2 + $0x8] sm:$0x3]
  %v35 = vcombine.high %v31, %v31
  %v37 = vunpack.c.l.s4 1983009808
  %v38 = vunpack.c.0.s8 %v37
  %v39 = vlaneseq
  %v40 = vshrl.u32 %v39, 7
  %v41 = vsub.s32 %v38, %v40
  %v42 = vrot.slane %v31, %v41
  %v44 = vunpack.c.l.s4 1983009808
  %v45 = vunpack.c.0.s8 %v44
  %v46 = vlaneseq
  %v47 = vshrl.u32 %v46, 7
  %v48 = vsub.s32 %v45, %v47
  %v49 = vrot.slane %v35, %v48
  %v50 = vcombine.high %v42, %v42
  %v51 = vcombine.high %v49, %v49
  %v53 = vunpack.c.l.s4 1983009808
  %v54 = vunpack.c.0.s8 %v53
  %v55 = vlaneseq
  %v56 = vshrl.u32 %v55, 7
  %v57 = vsub.s32 %v54, %v56
  %v58 = vrot.slane %v32, %v57
  %vm64 = vcmask 1041408
  %v65 = vsel %vm64, %v42, 0.0
  %v66 = vrot.slane %v65, 4
  %v67 = vadd.f32 %v65, %v66
  %v68 = vrot.slane %v67, 2
  %v69 = vadd.f32 %v67, %v68
  %v70 = vrot.slane %v69, 1
  %v71 = vadd.f32 %v69, %v70
  %v72 = vsel %vm64, %v50, 0.0
  %v73 = vrot.slane %v72, 4
  %v74 = vadd.f32 %v72, %v73
  %v75 = vrot.slane %v74, 2
  %v76 = vadd.f32 %v74, %v75
  %v77 = vrot.slane %v76, 1
  %v78 = vadd.f32 %v76, %v77
  %v79 = vsel %vm64, %v49, 0.0
  %v80 = vrot.slane %v79, 4
  %v81 = vadd.f32 %v79, %v80
  %v82 = vrot.slane %v81, 2
  %v83 = vadd.f32 %v81, %v82
  %v84 = vrot.slane %v83, 1
  %v85 = vadd.f32 %v83, %v84
  %v86 = vsel %vm64, %v51, 0.0
  %v87 = vrot.slane %v86, 4
  %v88 = vadd.f32 %v86, %v87
  %v89 = vrot.slane %v88, 2
  %v90 = vadd.f32 %v88, %v89
  %v91 = vrot.slane %v90, 1
  %v92 = vadd.f32 %v90, %v91
  %v93 = vsel %vm64, %v58, 0.0
  %v94 = vrot.slane %v93, 4
  %v95 = vadd.f32 %v93, %v94
  %v96 = vrot.slane %v95, 2
  %v97 = vadd.f32 %v95, %v96
  %v98 = vrot.slane %v97, 1
  %v99 = vadd.f32 %v97, %v98
  %vm100 = vcmask 154624
  %101 = vst.msk [vmem:[#allocation2] sm:$0xff] %vm100, 0.0
  %vm102 = vcmask 1047704
  %103 = vst.msk [vmem:[#allocation2 + $0x28] sm:$0xff] %vm102, 0.0
  %v104 = vld [vmem:[%s6] sm:$0xff]
  %v105 = vld [vmem:[%s1] sm:$0xff]
  %v106 = vld [vmem:[%s1 + $0x8] sm:$0xff]
  %v107 = vld [vmem:[%s1 + $0x10] sm:$0xff]
  %v108 = vld [vmem:[%s1 + $0x18] sm:$0xff]
  %110 = vset.pattern.permute.xlu0 1
  %111 = vperm.xlu0 %110, %v30
  %v112 = vpop.permute.xlu0 %111
  %vm114 = vcmask 261120
  %v116 = vsel %vm114, %v104, 0
  %118 = vmatprep.subr.mxu0 0.0
  %119 = vmatpush1.msra.mxu0 %v105
  %120 = vmatprep.subr.mxu0 0.0
  %121 = vmatpush1.msra.mxu0 %v106
  %122 = vmatprep.subr.mxu0 0.0
  %123 = vmatpush1.msra.mxu0 %v107
  %124 = vmatprep.subr.mxu0 0.0
  %125 = vmatpush1.msra.mxu0 %v108
  %126 = vmatprep.subr.mxu0 0.0
  %127 = vmatpush1.msra.mxu0 0.0
  %128 = vmatprep.subr.mxu0 0.0
  %129 = vmatpush1.msra.mxu0 0.0
  %130 = vmatprep.subr.mxu0 0.0
  %131 = vmatpush1.msra.mxu0 0.0
  %132 = vmatprep.subr.mxu0 0.0
  %133 = vmatpush1.msra.mxu0 0.0
  %134 = vmatprep.subr.mxu0 0.0
  %135 = vmatpush1.msra.mxu0 0.0
  %136 = vmatprep.subr.mxu0 0.0
  %137 = vmatpush1.msra.mxu0 0.0
  %138 = vmatprep.subr.mxu0 0.0
  %139 = vmatpush1.msra.mxu0 0.0
  %140 = vmatprep.subr.mxu0 0.0
  %141 = vmatpush1.msra.mxu0 0.0
  %142 = vmatprep.subr.mxu0 0.0
  %143 = vmatpush1.msra.mxu0 0.0
  %144 = vmatprep.subr.mxu0 0.0
  %145 = vmatpush1.msra.mxu0 0.0
  %146 = vmatprep.subr.mxu0 0.0
  %147 = vmatpush1.msra.mxu0 0.0
  %148 = vmatprep.subr.mxu0 0.0
  %149 = vmatpush1.msra.mxu0 0.0
  %150 = vmatprep.subr.mxu0 0.0
  %151 = vmatpush1.msra.mxu0 0.0
  %152 = vmatprep.subr.mxu0 0.0
  %153 = vmatpush1.msra.mxu0 0.0
  %154 = vmatprep.subr.mxu0 0.0
  %155 = vmatpush1.msra.mxu0 0.0
  %156 = vmatprep.subr.mxu0 0.0
  %157 = vmatpush1.msra.mxu0 0.0
  %158 = vmatprep.subr.mxu0 0.0
  %159 = vmatpush1.msra.mxu0 0.0
  %160 = vmatprep.subr.mxu0 0.0
  %161 = vmatpush1.msra.mxu0 0.0
  %162 = vmatprep.subr.mxu0 0.0
  %163 = vmatpush1.msra.mxu0 0.0
  %164 = vmatprep.subr.mxu0 0.0
  %165 = vmatpush1.msra.mxu0 0.0
  %166 = vmatprep.subr.mxu0 0.0
  %167 = vmatpush1.msra.mxu0 0.0
  %168 = vmatprep.subr.mxu0 0.0
  %169 = vmatpush1.msra.mxu0 0.0
  %170 = vmatprep.subr.mxu0 0.0
  %171 = vmatpush1.msra.mxu0 0.0
  %172 = vmatprep.subr.mxu0 0.0
  %173 = vmatpush1.msra.mxu0 0.0
  %174 = vmatprep.subr.mxu0 0.0
  %175 = vmatpush1.msra.mxu0 0.0
  %176 = vmatprep.subr.mxu0 0.0
  %177 = vmatpush1.msra.mxu0 0.0
  %178 = vmatprep.subr.mxu0 0.0
  %179 = vmatpush1.msra.mxu0 0.0
  %180 = vmatprep.subr.mxu0 0.0
  %181 = vmatpush1.msra.mxu0 0.0
  %182 = vmatprep.mubr.f32.mxu0 0.0
  %183 = vmatmul.mubr.f32.gmra.mrb[0].mxu0 %v116
  %v184 = vpop.f32.mrb[0].mxu0
  %v185 = vadd.f32 %v112, %v184
  %v186 = vpop.f32.mrb[0].mxu0
  %187 = vdwg.mxu0
  %v188 = vmax.f32 %v185, 0.0
  %190 = vset.pattern.permute.xlu0 0
  %191 = vperm.xlu0 %190, %v188
  %v192 = vpop.permute.xlu0 %191
  %v194 = vlaneseq
  %v195 = vshrl.u32 %v194, 7
  %v196 = vsub.s32 0, %v195
  %v197 = vrot.slane %v31, %v196
  %v198 = vlaneseq
  %v199 = vshrl.u32 %v198, 7
  %v200 = vsub.s32 2, %v199
  %v201 = vrot.slane %v31, %v200
  %v202 = vlaneseq
  %v203 = vshrl.u32 %v202, 7
  %v204 = vsub.s32 4, %v203
  %v205 = vrot.slane %v31, %v204
  %v206 = vlaneseq
  %v207 = vshrl.u32 %v206, 7
  %v208 = vsub.s32 6, %v207
  %v209 = vrot.slane %v31, %v208
  %v210 = vlaneseq
  %v211 = vshrl.u32 %v210, 7
  %v212 = vsub.s32 0, %v211
  %v213 = vrot.slane %v32, %v212
  %v219 = vlaneseq
  %v220 = vshrl.u32 %v219, 7
  %v221 = vsub.s32 0, %v220
  %v222 = vrot.slane %v197, %v221
  %v223 = vlaneseq
  %v224 = vshrl.u32 %v223, 7
  %v225 = vsub.s32 0, %v224
  %v226 = vrot.slane %v201, %v225
  %v227 = vlaneseq
  %v228 = vshrl.u32 %v227, 7
  %v229 = vsub.s32 0, %v228
  %v230 = vrot.slane %v205, %v229
  %v231 = vlaneseq
  %v232 = vshrl.u32 %v231, 7
  %v233 = vsub.s32 0, %v232
  %v234 = vrot.slane %v209, %v233
  %v235 = vlaneseq
  %v236 = vshrl.u32 %v235, 7
  %v237 = vsub.s32 0, %v236
  %v238 = vrot.slane %v213, %v237
  %v239 = vmul.f32 %v192, %v222
  %v240 = vmul.f32 %v192, %v226
  %v241 = vmul.f32 %v192, %v230
  %v242 = vmul.f32 %v192, %v234
  %v243 = vmul.f32 %v192, %v238
  %244 = vset.pattern.permute.xlu0 1
  %245 = vperm.xlu0 %244, %v188
  %v246 = vpop.permute.xlu0 %245
  %v248 = vlaneseq
  %v249 = vshrl.u32 %v248, 7
  %v250 = vsub.s32 1, %v249
  %v251 = vrot.slane %v31, %v250
  %v252 = vlaneseq
  %v253 = vshrl.u32 %v252, 7
  %v254 = vsub.s32 3, %v253
  %v255 = vrot.slane %v31, %v254
  %v256 = vlaneseq
  %v257 = vshrl.u32 %v256, 7
  %v258 = vsub.s32 5, %v257
  %v259 = vrot.slane %v31, %v258
  %v260 = vlaneseq
  %v261 = vshrl.u32 %v260, 7
  %v262 = vsub.s32 7, %v261
  %v263 = vrot.slane %v31, %v262
  %v264 = vlaneseq
  %v265 = vshrl.u32 %v264, 7
  %v266 = vsub.s32 1, %v265
  %v267 = vrot.slane %v32, %v266
  %v273 = vlaneseq
  %v274 = vshrl.u32 %v273, 7
  %v275 = vsub.s32 1, %v274
  %v276 = vrot.slane %v251, %v275
  %v277 = vlaneseq
  %v278 = vshrl.u32 %v277, 7
  %v279 = vsub.s32 1, %v278
  %v280 = vrot.slane %v255, %v279
  %v281 = vlaneseq
  %v282 = vshrl.u32 %v281, 7
  %v283 = vsub.s32 1, %v282
  %v284 = vrot.slane %v259, %v283
  %v285 = vlaneseq
  %v286 = vshrl.u32 %v285, 7
  %v287 = vsub.s32 1, %v286
  %v288 = vrot.slane %v263, %v287
  %v289 = vlaneseq
  %v290 = vshrl.u32 %v289, 7
  %v291 = vsub.s32 1, %v290
  %v292 = vrot.slane %v267, %v291
  %v293 = vmul.f32 %v246, %v276
  %v294 = vmul.f32 %v246, %v280
  %v295 = vmul.f32 %v246, %v284
  %v296 = vmul.f32 %v246, %v288
  %v297 = vmul.f32 %v246, %v292
  %v298 = vadd.f32 %v239, %v293
  %v299 = vadd.f32 %v240, %v294
  %v300 = vadd.f32 %v241, %v295
  %v301 = vadd.f32 %v242, %v296
  %v302 = vadd.f32 %v243, %v297
  %v303 = vld [vmem:[%s3] sm:$0xff]
  %v304 = vld [vmem:[%s0] sm:$0xff]
  %v305 = vld [vmem:[%s0 + $0x8] sm:$0xff]
  %v306 = vld [vmem:[%s0 + $0x10] sm:$0xf]
  %v307 = vld [vmem:[%s0 + $0x18] sm:$0xff]
  %v308 = vld [vmem:[%s0 + $0x20] sm:$0xff]
  %v309 = vld [vmem:[%s0 + $0x28] sm:$0xf]
  %v310 = vld [vmem:[%s0] sm:$0xff]
  %v311 = vld [vmem:[%s0 + $0x8] sm:$0xff]
  %v312 = vld [vmem:[%s0 + $0x10] sm:$0xff]
  %v313 = vld [vmem:[%s0 + $0x18] sm:$0xff]
  %v314 = vld [vmem:[%s0 + $0x20] sm:$0xff]
  %v315 = vld [vmem:[%s0 + $0x28] sm:$0xff]
  %v322 = vunpack.c.l.b16 %v304
  %v323 = vunpack.c.h.b16 %v304
  %v324 = vunpack.c.l.b16 %v305
  %v325 = vunpack.c.h.b16 %v305
  %v326 = vunpack.c.l.b16 %v306
  %v327 = vunpack.c.l.b16 %v307
  %v328 = vunpack.c.h.b16 %v307
  %v329 = vunpack.c.l.b16 %v308
  %v330 = vunpack.c.h.b16 %v308
  %v331 = vunpack.c.l.b16 %v309
  %v332 = vpack.c.b16 %v327, %v322
  %v333 = vpack.c.b16 %v328, %v323
  %v334 = vpack.c.b16 %v329, %v324
  %v335 = vpack.c.b16 %v330, %v325
  %v336 = vpack.c.b16 %v331, %v326
  %v348 = vunpack.c.l.b16 %v310
  %v349 = vunpack.c.h.b16 %v310
  %v350 = vunpack.c.l.b16 %v311
  %v351 = vunpack.c.h.b16 %v311
  %v352 = vunpack.c.l.b16 %v312
  %v353 = vunpack.c.h.b16 %v312
  %v354 = vunpack.c.l.b16 %v313
  %v355 = vunpack.c.h.b16 %v313
  %v356 = vunpack.c.l.b16 %v314
  %v357 = vunpack.c.h.b16 %v314
  %v358 = vunpack.c.l.b16 %v315
  %v359 = vunpack.c.h.b16 %v315
  %v360 = vpack.c.b16 %v354, %v348
  %v361 = vpack.c.b16 %v355, %v349
  %v362 = vpack.c.b16 %v356, %v350
  %v363 = vpack.c.b16 %v357, %v351
  %v364 = vpack.c.b16 %v358, %v352
  %v365 = vpack.c.b16 %v359, %v353
  %366 = vrot.lane.b32.xlu0 %v360, 127
  %v367 = vpop.permute.xlu0 %366
  %368 = vrot.lane.b32.xlu0 %v361, 127
  %v369 = vpop.permute.xlu0 %368
  %370 = vrot.lane.b32.xlu0 %v362, 127
  %v371 = vpop.permute.xlu0 %370
  %372 = vrot.lane.b32.xlu0 %v363, 127
  %v373 = vpop.permute.xlu0 %372
  %374 = vrot.lane.b32.xlu0 %v364, 127
  %v375 = vpop.permute.xlu0 %374
  %376 = vrot.lane.b32.xlu0 %v365, 127
  %v377 = vpop.permute.xlu0 %376
  %vm378 = vcmask 1039360
  %v379 = vsel %vm378, %v367, %v369
  %v380 = vsel %vm378, %v369, %v371
  %v381 = vsel %vm378, %v371, %v373
  %v382 = vsel %vm378, %v373, %v375
  %v383 = vsel %vm378, %v375, %v377
  %389 = vrot.lane.b32.xlu0 %v360, 126
  %v390 = vpop.permute.xlu0 %389
  %391 = vrot.lane.b32.xlu0 %v361, 126
  %v392 = vpop.permute.xlu0 %391
  %393 = vrot.lane.b32.xlu0 %v362, 126
  %v394 = vpop.permute.xlu0 %393
  %395 = vrot.lane.b32.xlu0 %v363, 126
  %v396 = vpop.permute.xlu0 %395
  %397 = vrot.lane.b32.xlu0 %v364, 126
  %v398 = vpop.permute.xlu0 %397
  %399 = vrot.lane.b32.xlu0 %v365, 126
  %v400 = vpop.permute.xlu0 %399
  %vm401 = vcmask 1031168
  %v402 = vsel %vm401, %v390, %v392
  %v403 = vsel %vm401, %v392, %v394
  %v404 = vsel %vm401, %v394, %v396
  %v405 = vsel %vm401, %v396, %v398
  %v406 = vsel %vm401, %v398, %v400
  %412 = vrot.lane.b32.xlu0 %v360, 110
  %v413 = vpop.permute.xlu0 %412
  %414 = vrot.lane.b32.xlu0 %v361, 110
  %v415 = vpop.permute.xlu0 %414
  %416 = vrot.lane.b32.xlu0 %v362, 110
  %v417 = vpop.permute.xlu0 %416
  %418 = vrot.lane.b32.xlu0 %v363, 110
  %v419 = vpop.permute.xlu0 %418
  %420 = vrot.lane.b32.xlu0 %v364, 110
  %v421 = vpop.permute.xlu0 %420
  %422 = vrot.lane.b32.xlu0 %v365, 110
  %v423 = vpop.permute.xlu0 %422
  %vm424 = vcmask 900096
  %v425 = vsel %vm424, %v413, %v415
  %v426 = vsel %vm424, %v415, %v417
  %v427 = vsel %vm424, %v417, %v419
  %v428 = vsel %vm424, %v419, %v421
  %v429 = vsel %vm424, %v421, %v423
  %435 = vrot.lane.b32.xlu0 %v360, 109
  %v436 = vpop.permute.xlu0 %435
  %437 = vrot.lane.b32.xlu0 %v361, 109
  %v438 = vpop.permute.xlu0 %437
  %439 = vrot.lane.b32.xlu0 %v362, 109
  %v440 = vpop.permute.xlu0 %439
  %441 = vrot.lane.b32.xlu0 %v363, 109
  %v442 = vpop.permute.xlu0 %441
  %443 = vrot.lane.b32.xlu0 %v364, 109
  %v444 = vpop.permute.xlu0 %443
  %445 = vrot.lane.b32.xlu0 %v365, 109
  %v446 = vpop.permute.xlu0 %445
  %vm447 = vcmask 891904
  %v448 = vsel %vm447, %v436, %v438
  %v449 = vsel %vm447, %v438, %v440
  %v450 = vsel %vm447, %v440, %v442
  %v451 = vsel %vm447, %v442, %v444
  %v452 = vsel %vm447, %v444, %v446
  %458 = vrot.lane.b32.xlu0 %v360, 108
  %v459 = vpop.permute.xlu0 %458
  %460 = vrot.lane.b32.xlu0 %v361, 108
  %v461 = vpop.permute.xlu0 %460
  %462 = vrot.lane.b32.xlu0 %v362, 108
  %v463 = vpop.permute.xlu0 %462
  %464 = vrot.lane.b32.xlu0 %v363, 108
  %v465 = vpop.permute.xlu0 %464
  %466 = vrot.lane.b32.xlu0 %v364, 108
  %v467 = vpop.permute.xlu0 %466
  %468 = vrot.lane.b32.xlu0 %v365, 108
  %v469 = vpop.permute.xlu0 %468
  %vm470 = vcmask 883712
  %v471 = vsel %vm470, %v459, %v461
  %v472 = vsel %vm470, %v461, %v463
  %v473 = vsel %vm470, %v463, %v465
  %v474 = vsel %vm470, %v465, %v467
  %v475 = vsel %vm470, %v467, %v469
  %481 = vrot.lane.b32.xlu0 %v360, 92
  %v482 = vpop.permute.xlu0 %481
  %483 = vrot.lane.b32.xlu0 %v361, 92
  %v484 = vpop.permute.xlu0 %483
  %485 = vrot.lane.b32.xlu0 %v362, 92
  %v486 = vpop.permute.xlu0 %485
  %487 = vrot.lane.b32.xlu0 %v363, 92
  %v488 = vpop.permute.xlu0 %487
  %489 = vrot.lane.b32.xlu0 %v364, 92
  %v490 = vpop.permute.xlu0 %489
  %491 = vrot.lane.b32.xlu0 %v365, 92
  %v492 = vpop.permute.xlu0 %491
  %vm493 = vcmask 752640
  %v494 = vsel %vm493, %v482, %v484
  %v495 = vsel %vm493, %v484, %v486
  %v496 = vsel %vm493, %v486, %v488
  %v497 = vsel %vm493, %v488, %v490
  %v498 = vsel %vm493, %v490, %v492
  %504 = vrot.lane.b32.xlu0 %v360, 91
  %v505 = vpop.permute.xlu0 %504
  %506 = vrot.lane.b32.xlu0 %v361, 91
  %v507 = vpop.permute.xlu0 %506
  %508 = vrot.lane.b32.xlu0 %v362, 91
  %v509 = vpop.permute.xlu0 %508
  %510 = vrot.lane.b32.xlu0 %v363, 91
  %v511 = vpop.permute.xlu0 %510
  %512 = vrot.lane.b32.xlu0 %v364, 91
  %v513 = vpop.permute.xlu0 %512
  %514 = vrot.lane.b32.xlu0 %v365, 91
  %v515 = vpop.permute.xlu0 %514
  %vm516 = vcmask 744448
  %v517 = vsel %vm516, %v505, %v507
  %v518 = vsel %vm516, %v507, %v509
  %v519 = vsel %vm516, %v509, %v511
  %v520 = vsel %vm516, %v511, %v513
  %v521 = vsel %vm516, %v513, %v515
  %527 = vrot.lane.b32.xlu0 %v360, 90
  %v528 = vpop.permute.xlu0 %527
  %529 = vrot.lane.b32.xlu0 %v361, 90
  %v530 = vpop.permute.xlu0 %529
  %531 = vrot.lane.b32.xlu0 %v362, 90
  %v532 = vpop.permute.xlu0 %531
  %533 = vrot.lane.b32.xlu0 %v363, 90
  %v534 = vpop.permute.xlu0 %533
  %535 = vrot.lane.b32.xlu0 %v364, 90
  %v536 = vpop.permute.xlu0 %535
  %537 = vrot.lane.b32.xlu0 %v365, 90
  %v538 = vpop.permute.xlu0 %537
  %vm539 = vcmask 736256
  %v540 = vsel %vm539, %v528, %v530
  %v541 = vsel %vm539, %v530, %v532
  %v542 = vsel %vm539, %v532, %v534
  %v543 = vsel %vm539, %v534, %v536
  %v544 = vsel %vm539, %v536, %v538
  %550 = vset.pattern.permute.xlu0 0
  %551 = vperm.xlu0 %550, %v30
  %v552 = vpop.permute.xlu0 %551
  %v555 = vunpack.c.l.b16 %v303
  %v556 = vunpack.c.h.b16 %v303
  %v557 = vpack.c.b16 %v555, %v555
  %v558 = vpack.c.b16 %v556, %v556
  %vm560 = vcmask 130048
  %v562 = vsel %vm560, %v558, 0
  %564 = vmatprep.subr.bf16.mxu0 %v333
  %565 = vmatpush1.bf16.msra.mxu0 %v332
  %566 = vmatprep.subr.bf16.mxu0 %v380
  %567 = vmatpush1.bf16.msra.mxu0 %v379
  %568 = vmatprep.subr.bf16.mxu0 %v403
  %569 = vmatpush1.bf16.msra.mxu0 %v402
  %570 = vmatprep.subr.bf16.mxu0 %v426
  %571 = vmatpush1.bf16.msra.mxu0 %v425
  %572 = vmatprep.subr.bf16.mxu0 %v449
  %573 = vmatpush1.bf16.msra.mxu0 %v448
  %574 = vmatprep.subr.bf16.mxu0 %v472
  %575 = vmatpush1.bf16.msra.mxu0 %v471
  %576 = vmatprep.subr.bf16.mxu0 %v495
  %577 = vmatpush1.bf16.msra.mxu0 %v494
  %578 = vmatprep.subr.bf16.mxu0 %v518
  %579 = vmatpush1.bf16.msra.mxu0 %v517
  %580 = vmatprep.subr.bf16.mxu0 %v541
  %581 = vmatpush1.bf16.msra.mxu0 %v540
  %582 = vmatprep.subr.bf16.mxu0 0
  %583 = vmatpush1.bf16.msra.mxu0 0
  %584 = vmatprep.subr.bf16.mxu0 0
  %585 = vmatpush1.bf16.msra.mxu0 0
  %586 = vmatprep.subr.bf16.mxu0 0
  %587 = vmatpush1.bf16.msra.mxu0 0
  %588 = vmatprep.subr.bf16.mxu0 0
  %589 = vmatpush1.bf16.msra.mxu0 0
  %590 = vmatprep.subr.bf16.mxu0 0
  %591 = vmatpush1.bf16.msra.mxu0 0
  %592 = vmatprep.subr.bf16.mxu0 0
  %593 = vmatpush1.bf16.msra.mxu0 0
  %594 = vmatprep.subr.bf16.mxu0 0
  %595 = vmatpush1.bf16.msra.mxu0 0
  %596 = vmatprep.mubr.bf16.mxu0 %v562
  %597 = vmatmul.mubr.bf16.gmra.mrb[0].mxu0 %v557
  %v598 = vpop.f32.mrb[0].mxu0
  %v599 = vadd.f32 %v552, %v598
  %v600 = vpop.f32.mrb[0].mxu0
  %v601 = vadd.f32 %v552, %v600
  %v602 = vpop.f32.mrb[0].mxu0
  %v603 = vpop.f32.mrb[0].mxu0
  %604 = vdwg.mxu0
  %605 = vmatprep.subr.bf16.mxu0 %v335
  %606 = vmatpush1.bf16.msra.mxu0 %v334
  %607 = vmatprep.subr.bf16.mxu0 %v382
  %608 = vmatpush1.bf16.msra.mxu0 %v381
  %609 = vmatprep.subr.bf16.mxu0 %v405
  %610 = vmatpush1.bf16.msra.mxu0 %v404
  %611 = vmatprep.subr.bf16.mxu0 %v428
  %612 = vmatpush1.bf16.msra.mxu0 %v427
  %613 = vmatprep.subr.bf16.mxu0 %v451
  %614 = vmatpush1.bf16.msra.mxu0 %v450
  %615 = vmatprep.subr.bf16.mxu0 %v474
  %616 = vmatpush1.bf16.msra.mxu0 %v473
  %617 = vmatprep.subr.bf16.mxu0 %v497
  %618 = vmatpush1.bf16.msra.mxu0 %v496
  %619 = vmatprep.subr.bf16.mxu0 %v520
  %620 = vmatpush1.bf16.msra.mxu0 %v519
  %621 = vmatprep.subr.bf16.mxu0 %v543
  %622 = vmatpush1.bf16.msra.mxu0 %v542
  %623 = vmatprep.subr.bf16.mxu0 0
  %624 = vmatpush1.bf16.msra.mxu0 0
  %625 = vmatprep.subr.bf16.mxu0 0
  %626 = vmatpush1.bf16.msra.mxu0 0
  %627 = vmatprep.subr.bf16.mxu0 0
  %628 = vmatpush1.bf16.msra.mxu0 0
  %629 = vmatprep.subr.bf16.mxu0 0
  %630 = vmatpush1.bf16.msra.mxu0 0
  %631 = vmatprep.subr.bf16.mxu0 0
  %632 = vmatpush1.bf16.msra.mxu0 0
  %633 = vmatprep.subr.bf16.mxu0 0
  %634 = vmatpush1.bf16.msra.mxu0 0
  %635 = vmatprep.subr.bf16.mxu0 0
  %636 = vmatpush1.bf16.msra.mxu0 0
  %637 = vmatprep.mubr.bf16.mxu0 %v562
  %638 = vmatmul.mubr.bf16.gmra.mrb[0].mxu0 %v557
  %v639 = vpop.f32.mrb[0].mxu0
  %v640 = vadd.f32 %v552, %v639
  %v641 = vpop.f32.mrb[0].mxu0
  %v642 = vadd.f32 %v552, %v641
  %v643 = vpop.f32.mrb[0].mxu0
  %v644 = vpop.f32.mrb[0].mxu0
  %645 = vdwg.mxu0
  %646 = vmatprep.subr.bf16.mxu0 0
  %647 = vmatpush1.bf16.msra.mxu0 %v336
  %648 = vmatprep.subr.bf16.mxu0 0
  %649 = vmatpush1.bf16.msra.mxu0 %v383
  %650 = vmatprep.subr.bf16.mxu0 0
  %651 = vmatpush1.bf16.msra.mxu0 %v406
  %652 = vmatprep.subr.bf16.mxu0 0
  %653 = vmatpush1.bf16.msra.mxu0 %v429
  %654 = vmatprep.subr.bf16.mxu0 0
  %655 = vmatpush1.bf16.msra.mxu0 %v452
  %656 = vmatprep.subr.bf16.mxu0 0
  %657 = vmatpush1.bf16.msra.mxu0 %v475
  %658 = vmatprep.subr.bf16.mxu0 0
  %659 = vmatpush1.bf16.msra.mxu0 %v498
  %660 = vmatprep.subr.bf16.mxu0 0
  %661 = vmatpush1.bf16.msra.mxu0 %v521
  %662 = vmatprep.subr.bf16.mxu0 0
  %663 = vmatpush1.bf16.msra.mxu0 %v544
  %664 = vmatprep.subr.bf16.mxu0 0
  %665 = vmatpush1.bf16.msra.mxu0 0
  %666 = vmatprep.subr.bf16.mxu0 0
  %667 = vmatpush1.bf16.msra.mxu0 0
  %668 = vmatprep.subr.bf16.mxu0 0
  %669 = vmatpush1.bf16.msra.mxu0 0
  %670 = vmatprep.subr.bf16.mxu0 0
  %671 = vmatpush1.bf16.msra.mxu0 0
  %672 = vmatprep.subr.bf16.mxu0 0
  %673 = vmatpush1.bf16.msra.mxu0 0
  %674 = vmatprep.subr.bf16.mxu0 0
  %675 = vmatpush1.bf16.msra.mxu0 0
  %676 = vmatprep.subr.bf16.mxu0 0
  %677 = vmatpush1.bf16.msra.mxu0 0
  %678 = vmatprep.mubr.bf16.mxu0 %v562
  %679 = vmatmul.mubr.bf16.gmra.mrb[0].mxu0 %v557
  %v680 = vpop.f32.mrb[0].mxu0
  %v681 = vadd.f32 %v552, %v680
  %v682 = vpop.f32.mrb[0].mxu0
  %v683 = vpop.f32.mrb[0].mxu0
  %v684 = vpop.f32.mrb[0].mxu0
  %685 = vdwg.mxu0
  %v686 = vmax.f32 %v599, 0.0
  %v687 = vmax.f32 %v601, 0.0
  %v688 = vmax.f32 %v640, 0.0
  %v689 = vmax.f32 %v642, 0.0
  %v690 = vmax.f32 %v681, 0.0
  %v691 = vmul.f32 %v686, %v71
  %v692 = vmul.f32 %v687, %v78
  %v693 = vmul.f32 %v688, %v85
  %v694 = vmul.f32 %v689, %v92
  %v695 = vmul.f32 %v690, %v99
  %v696 = vadd.f32 %v691, %v692
  %v697 = vadd.f32 %v696, %v693
  %v698 = vadd.f32 %v697, %v694
  %v699 = vadd.f32 %v698, %v695
  %700 = vadd.xlane.f32.xlu0 %v699
  %v701 = vpop.xlane.xlu0 %700
  %v702 = vmul.f32 %v691, %v691
  %v703 = vmul.f32 %v692, %v692
  %v704 = vmul.f32 %v693, %v693
  %v705 = vmul.f32 %v694, %v694
  %v706 = vmul.f32 %v695, %v695
  %v707 = vadd.f32 %v702, %v703
  %v708 = vadd.f32 %v707, %v704
  %v709 = vadd.f32 %v708, %v705
  %v710 = vadd.f32 %v709, %v706
  %711 = vadd.xlane.f32.xlu0 %v710
  %v712 = vpop.xlane.xlu0 %711
  %v713 = vmul.f32 %v701, 0.001953125
  %v714 = vmul.f32 %v712, 0.001953125
  %v715 = vmul.f32 %v713, %v713
  %v716 = vsub.f32 %v714, %v715
  %v717 = vmax.f32 %v716, 0.0
  %v718 = vadd.f32 %v717, 1e-05
  %v719 = vrsqrt.pop %v718
  %v720 = vmul.f32 %v719, %v30
  %v721 = vmul.f32 %v713, %v720
  %723 = vrot.lane.b32.xlu0 %v721, 1
  %v724 = vpop.permute.xlu0 %723
  %v726 = vsub.f32 %v30, %v724
  %728 = vset.pattern.permute.xlu0 2
  %729 = vperm.xlu0 %728, %v720
  %v730 = vpop.permute.xlu0 %729
  %v732 = vmul.f32 %v686, %v730
  %v733 = vmul.f32 %v687, %v730
  %v734 = vmul.f32 %v688, %v730
  %v735 = vmul.f32 %v689, %v730
  %v736 = vmul.f32 %v690, %v730
  %738 = vset.pattern.permute.xlu0 3
  %739 = vperm.xlu0 %738, %v726
  %v740 = vpop.permute.xlu0 %739
  %v742 = vadd.f32 %v732, %v740
  %v743 = vadd.f32 %v733, %v740
  %v744 = vadd.f32 %v734, %v740
  %v745 = vadd.f32 %v735, %v740
  %v746 = vadd.f32 %v736, %v740
  %v747 = vmul.f32 %v742, %v71
  %v748 = vmul.f32 %v743, %v78
  %v749 = vmul.f32 %v744, %v85
  %v750 = vmul.f32 %v745, %v92
  %v751 = vmul.f32 %v746, %v99
  %v752 = vadd.f32 %v747, %v298
  %v753 = vadd.f32 %v748, %v299
  %v754 = vadd.f32 %v749, %v300
  %v755 = vadd.f32 %v750, %v301
  %v756 = vadd.f32 %v751, %v302
  %762 = vrot.lane.b32.xlu0 %v752, 19
  %v763 = vpop.permute.xlu0 %762
  %764 = vrot.lane.b32.xlu0 %v753, 19
  %v765 = vpop.permute.xlu0 %764
  %766 = vrot.lane.b32.xlu0 %v754, 19
  %v767 = vpop.permute.xlu0 %766
  %768 = vrot.lane.b32.xlu0 %v755, 19
  %v769 = vpop.permute.xlu0 %768
  %770 = vrot.lane.b32.xlu0 %v756, 19
  %v771 = vpop.permute.xlu0 %770
  %v772 = vsel %vm100, %v763, %v765
  %v773 = vsel %vm100, %v765, %v767
  %v774 = vsel %vm100, %v767, %v769
  %v775 = vsel %vm100, %v769, %v771
  %782 = vst.msk [vmem:[#allocation2] sm:$0xff] %vm102, %v763
  %783 = vst [vmem:[#allocation2 + $0x8] sm:$0xff] %v772
  %784 = vst [vmem:[#allocation2 + $0x10] sm:$0xff] %v773
  %785 = vst [vmem:[#allocation2 + $0x18] sm:$0xff] %v774
  %786 = vst [vmem:[#allocation2 + $0x20] sm:$0xff] %v775
  %787 = vst.msk [vmem:[#allocation2 + $0x28] sm:$0xff] %vm100, %v771
  %v788 = vld [vmem:[%s4] sm:$0xff]
  %v789 = vld [vmem:[#allocation2] sm:$0xff]
  %v790 = vld [vmem:[#allocation2 + $0x8] sm:$0xff]
  %v791 = vld [vmem:[#allocation2 + $0x10] sm:$0xff]
  %v792 = vld [vmem:[#allocation2 + $0x18] sm:$0xff]
  %v793 = vld [vmem:[#allocation2 + $0x20] sm:$0xff]
  %v794 = vld [vmem:[#allocation2] sm:$0xff]
  %v795 = vld [vmem:[#allocation2 + $0x8] sm:$0xff]
  %v796 = vld [vmem:[#allocation2 + $0x10] sm:$0xff]
  %v797 = vld [vmem:[#allocation2 + $0x18] sm:$0xff]
  %v798 = vld [vmem:[#allocation2 + $0x20] sm:$0xff]
  %v799 = vld [vmem:[#allocation2 + $0x28] sm:$0xff]
  %806 = vrot.lane.b32.xlu0 %v794, 127
  %v807 = vpop.permute.xlu0 %806
  %808 = vrot.lane.b32.xlu0 %v795, 127
  %v809 = vpop.permute.xlu0 %808
  %810 = vrot.lane.b32.xlu0 %v796, 127
  %v811 = vpop.permute.xlu0 %810
  %812 = vrot.lane.b32.xlu0 %v797, 127
  %v813 = vpop.permute.xlu0 %812
  %814 = vrot.lane.b32.xlu0 %v798, 127
  %v815 = vpop.permute.xlu0 %814
  %816 = vrot.lane.b32.xlu0 %v799, 127
  %v817 = vpop.permute.xlu0 %816
  %vm818 = vcmask 1039360
  %v819 = vsel %vm818, %v807, %v809
  %v820 = vsel %vm818, %v809, %v811
  %v821 = vsel %vm818, %v811, %v813
  %v822 = vsel %vm818, %v813, %v815
  %v823 = vsel %vm818, %v815, %v817
  %829 = vrot.lane.b32.xlu0 %v794, 126
  %v830 = vpop.permute.xlu0 %829
  %831 = vrot.lane.b32.xlu0 %v795, 126
  %v832 = vpop.permute.xlu0 %831
  %833 = vrot.lane.b32.xlu0 %v796, 126
  %v834 = vpop.permute.xlu0 %833
  %835 = vrot.lane.b32.xlu0 %v797, 126
  %v836 = vpop.permute.xlu0 %835
  %837 = vrot.lane.b32.xlu0 %v798, 126
  %v838 = vpop.permute.xlu0 %837
  %839 = vrot.lane.b32.xlu0 %v799, 126
  %v840 = vpop.permute.xlu0 %839
  %vm841 = vcmask 1031168
  %v842 = vsel %vm841, %v830, %v832
  %v843 = vsel %vm841, %v832, %v834
  %v844 = vsel %vm841, %v834, %v836
  %v845 = vsel %vm841, %v836, %v838
  %v846 = vsel %vm841, %v838, %v840
  %852 = vrot.lane.b32.xlu0 %v794, 110
  %v853 = vpop.permute.xlu0 %852
  %854 = vrot.lane.b32.xlu0 %v795, 110
  %v855 = vpop.permute.xlu0 %854
  %856 = vrot.lane.b32.xlu0 %v796, 110
  %v857 = vpop.permute.xlu0 %856
  %858 = vrot.lane.b32.xlu0 %v797, 110
  %v859 = vpop.permute.xlu0 %858
  %860 = vrot.lane.b32.xlu0 %v798, 110
  %v861 = vpop.permute.xlu0 %860
  %862 = vrot.lane.b32.xlu0 %v799, 110
  %v863 = vpop.permute.xlu0 %862
  %vm864 = vcmask 900096
  %v865 = vsel %vm864, %v853, %v855
  %v866 = vsel %vm864, %v855, %v857
  %v867 = vsel %vm864, %v857, %v859
  %v868 = vsel %vm864, %v859, %v861
  %v869 = vsel %vm864, %v861, %v863
  %875 = vrot.lane.b32.xlu0 %v794, 109
  %v876 = vpop.permute.xlu0 %875
  %877 = vrot.lane.b32.xlu0 %v795, 109
  %v878 = vpop.permute.xlu0 %877
  %879 = vrot.lane.b32.xlu0 %v796, 109
  %v880 = vpop.permute.xlu0 %879
  %881 = vrot.lane.b32.xlu0 %v797, 109
  %v882 = vpop.permute.xlu0 %881
  %883 = vrot.lane.b32.xlu0 %v798, 109
  %v884 = vpop.permute.xlu0 %883
  %885 = vrot.lane.b32.xlu0 %v799, 109
  %v886 = vpop.permute.xlu0 %885
  %vm887 = vcmask 891904
  %v888 = vsel %vm887, %v876, %v878
  %v889 = vsel %vm887, %v878, %v880
  %v890 = vsel %vm887, %v880, %v882
  %v891 = vsel %vm887, %v882, %v884
  %v892 = vsel %vm887, %v884, %v886
  %898 = vrot.lane.b32.xlu0 %v794, 108
  %v899 = vpop.permute.xlu0 %898
  %900 = vrot.lane.b32.xlu0 %v795, 108
  %v901 = vpop.permute.xlu0 %900
  %902 = vrot.lane.b32.xlu0 %v796, 108
  %v903 = vpop.permute.xlu0 %902
  %904 = vrot.lane.b32.xlu0 %v797, 108
  %v905 = vpop.permute.xlu0 %904
  %906 = vrot.lane.b32.xlu0 %v798, 108
  %v907 = vpop.permute.xlu0 %906
  %908 = vrot.lane.b32.xlu0 %v799, 108
  %v909 = vpop.permute.xlu0 %908
  %vm910 = vcmask 883712
  %v911 = vsel %vm910, %v899, %v901
  %v912 = vsel %vm910, %v901, %v903
  %v913 = vsel %vm910, %v903, %v905
  %v914 = vsel %vm910, %v905, %v907
  %v915 = vsel %vm910, %v907, %v909
  %921 = vrot.lane.b32.xlu0 %v794, 92
  %v922 = vpop.permute.xlu0 %921
  %923 = vrot.lane.b32.xlu0 %v795, 92
  %v924 = vpop.permute.xlu0 %923
  %925 = vrot.lane.b32.xlu0 %v796, 92
  %v926 = vpop.permute.xlu0 %925
  %927 = vrot.lane.b32.xlu0 %v797, 92
  %v928 = vpop.permute.xlu0 %927
  %929 = vrot.lane.b32.xlu0 %v798, 92
  %v930 = vpop.permute.xlu0 %929
  %931 = vrot.lane.b32.xlu0 %v799, 92
  %v932 = vpop.permute.xlu0 %931
  %vm933 = vcmask 752640
  %v934 = vsel %vm933, %v922, %v924
  %v935 = vsel %vm933, %v924, %v926
  %v936 = vsel %vm933, %v926, %v928
  %v937 = vsel %vm933, %v928, %v930
  %v938 = vsel %vm933, %v930, %v932
  %944 = vrot.lane.b32.xlu0 %v794, 91
  %v945 = vpop.permute.xlu0 %944
  %946 = vrot.lane.b32.xlu0 %v795, 91
  %v947 = vpop.permute.xlu0 %946
  %948 = vrot.lane.b32.xlu0 %v796, 91
  %v949 = vpop.permute.xlu0 %948
  %950 = vrot.lane.b32.xlu0 %v797, 91
  %v951 = vpop.permute.xlu0 %950
  %952 = vrot.lane.b32.xlu0 %v798, 91
  %v953 = vpop.permute.xlu0 %952
  %954 = vrot.lane.b32.xlu0 %v799, 91
  %v955 = vpop.permute.xlu0 %954
  %vm956 = vcmask 744448
  %v957 = vsel %vm956, %v945, %v947
  %v958 = vsel %vm956, %v947, %v949
  %v959 = vsel %vm956, %v949, %v951
  %v960 = vsel %vm956, %v951, %v953
  %v961 = vsel %vm956, %v953, %v955
  %967 = vrot.lane.b32.xlu0 %v794, 90
  %v968 = vpop.permute.xlu0 %967
  %969 = vrot.lane.b32.xlu0 %v795, 90
  %v970 = vpop.permute.xlu0 %969
  %971 = vrot.lane.b32.xlu0 %v796, 90
  %v972 = vpop.permute.xlu0 %971
  %973 = vrot.lane.b32.xlu0 %v797, 90
  %v974 = vpop.permute.xlu0 %973
  %975 = vrot.lane.b32.xlu0 %v798, 90
  %v976 = vpop.permute.xlu0 %975
  %977 = vrot.lane.b32.xlu0 %v799, 90
  %v978 = vpop.permute.xlu0 %977
  %vm979 = vcmask 736256
  %v980 = vsel %vm979, %v968, %v970
  %v981 = vsel %vm979, %v970, %v972
  %v982 = vsel %vm979, %v972, %v974
  %v983 = vsel %vm979, %v974, %v976
  %v984 = vsel %vm979, %v976, %v978
  %990 = vset.pattern.permute.xlu0 4
  %991 = vperm.xlu0 %990, %v30
  %v992 = vpop.permute.xlu0 %991
  %vm994 = vcmask 588800
  %v996 = vsel %vm994, %v788, 0
  %998 = vmatprep.subr.mxu0 %v790
  %999 = vmatpush1.msra.mxu0 %v789
  %1000 = vmatprep.subr.mxu0 %v820
  %1001 = vmatpush1.msra.mxu0 %v819
  %1002 = vmatprep.subr.mxu0 %v843
  %1003 = vmatpush1.msra.mxu0 %v842
  %1004 = vmatprep.subr.mxu0 %v866
  %1005 = vmatpush1.msra.mxu0 %v865
  %1006 = vmatprep.subr.mxu0 %v889
  %1007 = vmatpush1.msra.mxu0 %v888
  %1008 = vmatprep.subr.mxu0 %v912
  %1009 = vmatpush1.msra.mxu0 %v911
  %1010 = vmatprep.subr.mxu0 %v935
  %1011 = vmatpush1.msra.mxu0 %v934
  %1012 = vmatprep.subr.mxu0 %v958
  %1013 = vmatpush1.msra.mxu0 %v957
  %1014 = vmatprep.subr.mxu0 %v981
  %1015 = vmatpush1.msra.mxu0 %v980
  %1016 = vmatprep.subr.mxu0 0.0
  %1017 = vmatpush1.msra.mxu0 0.0
  %1018 = vmatprep.subr.mxu0 0.0
  %1019 = vmatpush1.msra.mxu0 0.0
  %1020 = vmatprep.subr.mxu0 0.0
  %1021 = vmatpush1.msra.mxu0 0.0
  %1022 = vmatprep.subr.mxu0 0.0
  %1023 = vmatpush1.msra.mxu0 0.0
  %1024 = vmatprep.subr.mxu0 0.0
  %1025 = vmatpush1.msra.mxu0 0.0
  %1026 = vmatprep.subr.mxu0 0.0
  %1027 = vmatpush1.msra.mxu0 0.0
  %1028 = vmatprep.subr.mxu0 0.0
  %1029 = vmatpush1.msra.mxu0 0.0
  %1030 = vmatprep.subr.mxu0 0.0
  %1031 = vmatpush1.msra.mxu0 0.0
  %1032 = vmatprep.subr.mxu0 0.0
  %1033 = vmatpush1.msra.mxu0 0.0
  %1034 = vmatprep.subr.mxu0 0.0
  %1035 = vmatpush1.msra.mxu0 0.0
  %1036 = vmatprep.subr.mxu0 0.0
  %1037 = vmatpush1.msra.mxu0 0.0
  %1038 = vmatprep.subr.mxu0 0.0
  %1039 = vmatpush1.msra.mxu0 0.0
  %1040 = vmatprep.subr.mxu0 0.0
  %1041 = vmatpush1.msra.mxu0 0.0
  %1042 = vmatprep.subr.mxu0 0.0
  %1043 = vmatpush1.msra.mxu0 0.0
  %1044 = vmatprep.subr.mxu0 0.0
  %1045 = vmatpush1.msra.mxu0 0.0
  %1046 = vmatprep.subr.mxu0 0.0
  %1047 = vmatpush1.msra.mxu0 0.0
  %1048 = vmatprep.subr.mxu0 0.0
  %1049 = vmatpush1.msra.mxu0 0.0
  %1050 = vmatprep.subr.mxu0 0.0
  %1051 = vmatpush1.msra.mxu0 0.0
  %1052 = vmatprep.subr.mxu0 0.0
  %1053 = vmatpush1.msra.mxu0 0.0
  %1054 = vmatprep.subr.mxu0 0.0
  %1055 = vmatpush1.msra.mxu0 0.0
  %1056 = vmatprep.subr.mxu0 0.0
  %1057 = vmatpush1.msra.mxu0 0.0
  %1058 = vmatprep.subr.mxu0 0.0
  %1059 = vmatpush1.msra.mxu0 0.0
  %1060 = vmatprep.subr.mxu0 0.0
  %1061 = vmatpush1.msra.mxu0 0.0
  %1062 = vmatprep.mubr.f32.mxu0 0.0
  %1063 = vmatmul.mubr.f32.gmra.mrb[0].mxu0 %v996
  %v1064 = vpop.f32.mrb[0].mxu0
  %v1065 = vadd.f32 %v992, %v1064
  %v1066 = vpop.f32.mrb[0].mxu0
  %v1067 = vadd.f32 %v992, %v1066
  %1068 = vdwg.mxu0
  %1069 = vmatprep.subr.mxu0 %v792
  %1070 = vmatpush1.msra.mxu0 %v791
  %1071 = vmatprep.subr.mxu0 %v822
  %1072 = vmatpush1.msra.mxu0 %v821
  %1073 = vmatprep.subr.mxu0 %v845
  %1074 = vmatpush1.msra.mxu0 %v844
  %1075 = vmatprep.subr.mxu0 %v868
  %1076 = vmatpush1.msra.mxu0 %v867
  %1077 = vmatprep.subr.mxu0 %v891
  %1078 = vmatpush1.msra.mxu0 %v890
  %1079 = vmatprep.subr.mxu0 %v914
  %1080 = vmatpush1.msra.mxu0 %v913
  %1081 = vmatprep.subr.mxu0 %v937
  %1082 = vmatpush1.msra.mxu0 %v936
  %1083 = vmatprep.subr.mxu0 %v960
  %1084 = vmatpush1.msra.mxu0 %v959
  %1085 = vmatprep.subr.mxu0 %v983
  %1086 = vmatpush1.msra.mxu0 %v982
  %1087 = vmatprep.subr.mxu0 0.0
  %1088 = vmatpush1.msra.mxu0 0.0
  %1089 = vmatprep.subr.mxu0 0.0
  %1090 = vmatpush1.msra.mxu0 0.0
  %1091 = vmatprep.subr.mxu0 0.0
  %1092 = vmatpush1.msra.mxu0 0.0
  %1093 = vmatprep.subr.mxu0 0.0
  %1094 = vmatpush1.msra.mxu0 0.0
  %1095 = vmatprep.subr.mxu0 0.0
  %1096 = vmatpush1.msra.mxu0 0.0
  %1097 = vmatprep.subr.mxu0 0.0
  %1098 = vmatpush1.msra.mxu0 0.0
  %1099 = vmatprep.subr.mxu0 0.0
  %1100 = vmatpush1.msra.mxu0 0.0
  %1101 = vmatprep.subr.mxu0 0.0
  %1102 = vmatpush1.msra.mxu0 0.0
  %1103 = vmatprep.subr.mxu0 0.0
  %1104 = vmatpush1.msra.mxu0 0.0
  %1105 = vmatprep.subr.mxu0 0.0
  %1106 = vmatpush1.msra.mxu0 0.0
  %1107 = vmatprep.subr.mxu0 0.0
  %1108 = vmatpush1.msra.mxu0 0.0
  %1109 = vmatprep.subr.mxu0 0.0
  %1110 = vmatpush1.msra.mxu0 0.0
  %1111 = vmatprep.subr.mxu0 0.0
  %1112 = vmatpush1.msra.mxu0 0.0
  %1113 = vmatprep.subr.mxu0 0.0
  %1114 = vmatpush1.msra.mxu0 0.0
  %1115 = vmatprep.subr.mxu0 0.0
  %1116 = vmatpush1.msra.mxu0 0.0
  %1117 = vmatprep.subr.mxu0 0.0
  %1118 = vmatpush1.msra.mxu0 0.0
  %1119 = vmatprep.subr.mxu0 0.0
  %1120 = vmatpush1.msra.mxu0 0.0
  %1121 = vmatprep.subr.mxu0 0.0
  %1122 = vmatpush1.msra.mxu0 0.0
  %1123 = vmatprep.subr.mxu0 0.0
  %1124 = vmatpush1.msra.mxu0 0.0
  %1125 = vmatprep.subr.mxu0 0.0
  %1126 = vmatpush1.msra.mxu0 0.0
  %1127 = vmatprep.subr.mxu0 0.0
  %1128 = vmatpush1.msra.mxu0 0.0
  %1129 = vmatprep.subr.mxu0 0.0
  %1130 = vmatpush1.msra.mxu0 0.0
  %1131 = vmatprep.subr.mxu0 0.0
  %1132 = vmatpush1.msra.mxu0 0.0
  %1133 = vmatprep.mubr.f32.mxu0 0.0
  %1134 = vmatmul.mubr.f32.gmra.mrb[0].mxu0 %v996
  %v1135 = vpop.f32.mrb[0].mxu0
  %v1136 = vadd.f32 %v992, %v1135
  %v1137 = vpop.f32.mrb[0].mxu0
  %v1138 = vadd.f32 %v992, %v1137
  %1139 = vdwg.mxu0
  %1140 = vmatprep.subr.mxu0 0.0
  %1141 = vmatpush1.msra.mxu0 %v793
  %1142 = vmatprep.subr.mxu0 0.0
  %1143 = vmatpush1.msra.mxu0 %v823
  %1144 = vmatprep.subr.mxu0 0.0
  %1145 = vmatpush1.msra.mxu0 %v846
  %1146 = vmatprep.subr.mxu0 0.0
  %1147 = vmatpush1.msra.mxu0 %v869
  %1148 = vmatprep.subr.mxu0 0.0
  %1149 = vmatpush1.msra.mxu0 %v892
  %1150 = vmatprep.subr.mxu0 0.0
  %1151 = vmatpush1.msra.mxu0 %v915
  %1152 = vmatprep.subr.mxu0 0.0
  %1153 = vmatpush1.msra.mxu0 %v938
  %1154 = vmatprep.subr.mxu0 0.0
  %1155 = vmatpush1.msra.mxu0 %v961
  %1156 = vmatprep.subr.mxu0 0.0
  %1157 = vmatpush1.msra.mxu0 %v984
  %1158 = vmatprep.subr.mxu0 0.0
  %1159 = vmatpush1.msra.mxu0 0.0
  %1160 = vmatprep.subr.mxu0 0.0
  %1161 = vmatpush1.msra.mxu0 0.0
  %1162 = vmatprep.subr.mxu0 0.0
  %1163 = vmatpush1.msra.mxu0 0.0
  %1164 = vmatprep.subr.mxu0 0.0
  %1165 = vmatpush1.msra.mxu0 0.0
  %1166 = vmatprep.subr.mxu0 0.0
  %1167 = vmatpush1.msra.mxu0 0.0
  %1168 = vmatprep.subr.mxu0 0.0
  %1169 = vmatpush1.msra.mxu0 0.0
  %1170 = vmatprep.subr.mxu0 0.0
  %1171 = vmatpush1.msra.mxu0 0.0
  %1172 = vmatprep.subr.mxu0 0.0
  %1173 = vmatpush1.msra.mxu0 0.0
  %1174 = vmatprep.subr.mxu0 0.0
  %1175 = vmatpush1.msra.mxu0 0.0
  %1176 = vmatprep.subr.mxu0 0.0
  %1177 = vmatpush1.msra.mxu0 0.0
  %1178 = vmatprep.subr.mxu0 0.0
  %1179 = vmatpush1.msra.mxu0 0.0
  %1180 = vmatprep.subr.mxu0 0.0
  %1181 = vmatpush1.msra.mxu0 0.0
  %1182 = vmatprep.subr.mxu0 0.0
  %1183 = vmatpush1.msra.mxu0 0.0
  %1184 = vmatprep.subr.mxu0 0.0
  %1185 = vmatpush1.msra.mxu0 0.0
  %1186 = vmatprep.subr.mxu0 0.0
  %1187 = vmatpush1.msra.mxu0 0.0
  %1188 = vmatprep.subr.mxu0 0.0
  %1189 = vmatpush1.msra.mxu0 0.0
  %1190 = vmatprep.subr.mxu0 0.0
  %1191 = vmatpush1.msra.mxu0 0.0
  %1192 = vmatprep.subr.mxu0 0.0
  %1193 = vmatpush1.msra.mxu0 0.0
  %1194 = vmatprep.subr.mxu0 0.0
  %1195 = vmatpush1.msra.mxu0 0.0
  %1196 = vmatprep.subr.mxu0 0.0
  %1197 = vmatpush1.msra.mxu0 0.0
  %1198 = vmatprep.subr.mxu0 0.0
  %1199 = vmatpush1.msra.mxu0 0.0
  %1200 = vmatprep.subr.mxu0 0.0
  %1201 = vmatpush1.msra.mxu0 0.0
  %1202 = vmatprep.subr.mxu0 0.0
  %1203 = vmatpush1.msra.mxu0 0.0
  %1204 = vmatprep.mubr.f32.mxu0 0.0
  %1205 = vmatmul.mubr.f32.gmra.mrb[0].mxu0 %v996
  %v1206 = vpop.f32.mrb[0].mxu0
  %v1207 = vadd.f32 %v992, %v1206
  %v1208 = vpop.f32.mrb[0].mxu0
  %1209 = vdwg.mxu0
  %v1210 = vmax.f32 %v1065, 0.0
  %v1211 = vmax.f32 %v1067, 0.0
  %v1212 = vmax.f32 %v1136, 0.0
  %v1213 = vmax.f32 %v1138, 0.0
  %v1214 = vmax.f32 %v1207, 0.0
  %v1215 = vmul.f32 %v1210, %v71
  %v1216 = vmul.f32 %v1211, %v78
  %v1217 = vmul.f32 %v1212, %v85
  %v1218 = vmul.f32 %v1213, %v92
  %v1219 = vmul.f32 %v1214, %v99
  %v1220 = vadd.f32 %v1215, %v1216
  %v1221 = vadd.f32 %v1220, %v1217
  %v1222 = vadd.f32 %v1221, %v1218
  %v1223 = vadd.f32 %v1222, %v1219
  %1224 = vadd.xlane.f32.xlu0 %v1223
  %v1225 = vpop.xlane.xlu0 %1224
  %v1226 = vmul.f32 %v1215, %v1215
  %v1227 = vmul.f32 %v1216, %v1216
  %v1228 = vmul.f32 %v1217, %v1217
  %v1229 = vmul.f32 %v1218, %v1218
  %v1230 = vmul.f32 %v1219, %v1219
  %v1231 = vadd.f32 %v1226, %v1227
  %v1232 = vadd.f32 %v1231, %v1228
  %v1233 = vadd.f32 %v1232, %v1229
  %v1234 = vadd.f32 %v1233, %v1230
  %1235 = vadd.xlane.f32.xlu0 %v1234
  %v1236 = vpop.xlane.xlu0 %1235
  %v1237 = vmul.f32 %v1225, 0.001953125
  %v1238 = vmul.f32 %v1236, 0.001953125
  %v1239 = vmul.f32 %v1237, %v1237
  %v1240 = vsub.f32 %v1238, %v1239
  %v1241 = vmax.f32 %v1240, 0.0
  %v1242 = vadd.f32 %v1241, 1e-05
  %v1243 = vrsqrt.pop %v1242
  %v1244 = vmul.f32 %v1243, %v30
  %v1245 = vmul.f32 %v1237, %v1244
  %1247 = vrot.lane.b32.xlu0 %v1245, 1
  %v1248 = vpop.permute.xlu0 %1247
  %v1250 = vsub.f32 %v30, %v1248
  %1252 = vset.pattern.permute.xlu0 5
  %1253 = vperm.xlu0 %1252, %v1244
  %v1254 = vpop.permute.xlu0 %1253
  %v1256 = vmul.f32 %v1210, %v1254
  %v1257 = vmul.f32 %v1211, %v1254
  %v1258 = vmul.f32 %v1212, %v1254
  %v1259 = vmul.f32 %v1213, %v1254
  %v1260 = vmul.f32 %v1214, %v1254
  %1262 = vset.pattern.permute.xlu0 6
  %1263 = vperm.xlu0 %1262, %v1250
  %v1264 = vpop.permute.xlu0 %1263
  %v1266 = vadd.f32 %v1256, %v1264
  %v1267 = vadd.f32 %v1257, %v1264
  %v1268 = vadd.f32 %v1258, %v1264
  %v1269 = vadd.f32 %v1259, %v1264
  %v1270 = vadd.f32 %v1260, %v1264
  %v1271 = vmul.f32 %v1266, %v71
  %v1272 = vmul.f32 %v1267, %v78
  %v1273 = vmul.f32 %v1268, %v85
  %v1274 = vmul.f32 %v1269, %v92
  %v1275 = vmul.f32 %v1270, %v99
  %1281 = vrot.lane.b32.xlu0 %v1271, 19
  %v1282 = vpop.permute.xlu0 %1281
  %1283 = vrot.lane.b32.xlu0 %v1272, 19
  %v1284 = vpop.permute.xlu0 %1283
  %1285 = vrot.lane.b32.xlu0 %v1273, 19
  %v1286 = vpop.permute.xlu0 %1285
  %1287 = vrot.lane.b32.xlu0 %v1274, 19
  %v1288 = vpop.permute.xlu0 %1287
  %1289 = vrot.lane.b32.xlu0 %v1275, 19
  %v1290 = vpop.permute.xlu0 %1289
  %v1291 = vsel %vm100, %v1282, %v1284
  %v1292 = vsel %vm100, %v1284, %v1286
  %v1293 = vsel %vm100, %v1286, %v1288
  %v1294 = vsel %vm100, %v1288, %v1290
  %1301 = vst.msk [vmem:[#allocation2] sm:$0xff] %vm102, %v1282
  %1302 = vst [vmem:[#allocation2 + $0x8] sm:$0xff] %v1291
  %1303 = vst [vmem:[#allocation2 + $0x10] sm:$0xff] %v1292
  %1304 = vst [vmem:[#allocation2 + $0x18] sm:$0xff] %v1293
  %1305 = vst [vmem:[#allocation2 + $0x20] sm:$0xff] %v1294
  %1306 = vst.msk [vmem:[#allocation2 + $0x28] sm:$0xff] %vm100, %v1290
  %v1307 = vld [vmem:[%s5] sm:$0xff]
  %v1308 = vld [vmem:[#allocation2] sm:$0xff]
  %v1309 = vld [vmem:[#allocation2 + $0x8] sm:$0xff]
  %v1310 = vld [vmem:[#allocation2 + $0x10] sm:$0xff]
  %v1311 = vld [vmem:[#allocation2 + $0x18] sm:$0xff]
  %v1312 = vld [vmem:[#allocation2 + $0x20] sm:$0xff]
  %v1313 = vld [vmem:[#allocation2] sm:$0xff]
  %v1314 = vld [vmem:[#allocation2 + $0x8] sm:$0xff]
  %v1315 = vld [vmem:[#allocation2 + $0x10] sm:$0xff]
  %v1316 = vld [vmem:[#allocation2 + $0x18] sm:$0xff]
  %v1317 = vld [vmem:[#allocation2 + $0x20] sm:$0xff]
  %v1318 = vld [vmem:[#allocation2 + $0x28] sm:$0xff]
  %1325 = vrot.lane.b32.xlu0 %v1313, 127
  %v1326 = vpop.permute.xlu0 %1325
  %1327 = vrot.lane.b32.xlu0 %v1314, 127
  %v1328 = vpop.permute.xlu0 %1327
  %1329 = vrot.lane.b32.xlu0 %v1315, 127
  %v1330 = vpop.permute.xlu0 %1329
  %1331 = vrot.lane.b32.xlu0 %v1316, 127
  %v1332 = vpop.permute.xlu0 %1331
  %1333 = vrot.lane.b32.xlu0 %v1317, 127
  %v1334 = vpop.permute.xlu0 %1333
  %1335 = vrot.lane.b32.xlu0 %v1318, 127
  %v1336 = vpop.permute.xlu0 %1335
  %v1337 = vsel %vm818, %v1326, %v1328
  %v1338 = vsel %vm818, %v1328, %v1330
  %v1339 = vsel %vm818, %v1330, %v1332
  %v1340 = vsel %vm818, %v1332, %v1334
  %v1341 = vsel %vm818, %v1334, %v1336
  %1347 = vrot.lane.b32.xlu0 %v1313, 126
  %v1348 = vpop.permute.xlu0 %1347
  %1349 = vrot.lane.b32.xlu0 %v1314, 126
  %v1350 = vpop.permute.xlu0 %1349
  %1351 = vrot.lane.b32.xlu0 %v1315, 126
  %v1352 = vpop.permute.xlu0 %1351
  %1353 = vrot.lane.b32.xlu0 %v1316, 126
  %v1354 = vpop.permute.xlu0 %1353
  %1355 = vrot.lane.b32.xlu0 %v1317, 126
  %v1356 = vpop.permute.xlu0 %1355
  %1357 = vrot.lane.b32.xlu0 %v1318, 126
  %v1358 = vpop.permute.xlu0 %1357
  %v1359 = vsel %vm841, %v1348, %v1350
  %v1360 = vsel %vm841, %v1350, %v1352
  %v1361 = vsel %vm841, %v1352, %v1354
  %v1362 = vsel %vm841, %v1354, %v1356
  %v1363 = vsel %vm841, %v1356, %v1358
  %1369 = vrot.lane.b32.xlu0 %v1313, 125
  %v1370 = vpop.permute.xlu0 %1369
  %1371 = vrot.lane.b32.xlu0 %v1314, 125
  %v1372 = vpop.permute.xlu0 %1371
  %1373 = vrot.lane.b32.xlu0 %v1315, 125
  %v1374 = vpop.permute.xlu0 %1373
  %1375 = vrot.lane.b32.xlu0 %v1316, 125
  %v1376 = vpop.permute.xlu0 %1375
  %1377 = vrot.lane.b32.xlu0 %v1317, 125
  %v1378 = vpop.permute.xlu0 %1377
  %1379 = vrot.lane.b32.xlu0 %v1318, 125
  %v1380 = vpop.permute.xlu0 %1379
  %vm1381 = vcmask 1022976
  %v1382 = vsel %vm1381, %v1370, %v1372
  %v1383 = vsel %vm1381, %v1372, %v1374
  %v1384 = vsel %vm1381, %v1374, %v1376
  %v1385 = vsel %vm1381, %v1376, %v1378
  %v1386 = vsel %vm1381, %v1378, %v1380
  %1392 = vrot.lane.b32.xlu0 %v1313, 110
  %v1393 = vpop.permute.xlu0 %1392
  %1394 = vrot.lane.b32.xlu0 %v1314, 110
  %v1395 = vpop.permute.xlu0 %1394
  %1396 = vrot.lane.b32.xlu0 %v1315, 110
  %v1397 = vpop.permute.xlu0 %1396
  %1398 = vrot.lane.b32.xlu0 %v1316, 110
  %v1399 = vpop.permute.xlu0 %1398
  %1400 = vrot.lane.b32.xlu0 %v1317, 110
  %v1401 = vpop.permute.xlu0 %1400
  %1402 = vrot.lane.b32.xlu0 %v1318, 110
  %v1403 = vpop.permute.xlu0 %1402
  %v1404 = vsel %vm864, %v1393, %v1395
  %v1405 = vsel %vm864, %v1395, %v1397
  %v1406 = vsel %vm864, %v1397, %v1399
  %v1407 = vsel %vm864, %v1399, %v1401
  %v1408 = vsel %vm864, %v1401, %v1403
  %1414 = vrot.lane.b32.xlu0 %v1313, 109
  %v1415 = vpop.permute.xlu0 %1414
  %1416 = vrot.lane.b32.xlu0 %v1314, 109
  %v1417 = vpop.permute.xlu0 %1416
  %1418 = vrot.lane.b32.xlu0 %v1315, 109
  %v1419 = vpop.permute.xlu0 %1418
  %1420 = vrot.lane.b32.xlu0 %v1316, 109
  %v1421 = vpop.permute.xlu0 %1420
  %1422 = vrot.lane.b32.xlu0 %v1317, 109
  %v1423 = vpop.permute.xlu0 %1422
  %1424 = vrot.lane.b32.xlu0 %v1318, 109
  %v1425 = vpop.permute.xlu0 %1424
  %v1426 = vsel %vm887, %v1415, %v1417
  %v1427 = vsel %vm887, %v1417, %v1419
  %v1428 = vsel %vm887, %v1419, %v1421
  %v1429 = vsel %vm887, %v1421, %v1423
  %v1430 = vsel %vm887, %v1423, %v1425
  %1436 = vrot.lane.b32.xlu0 %v1313, 108
  %v1437 = vpop.permute.xlu0 %1436
  %1438 = vrot.lane.b32.xlu0 %v1314, 108
  %v1439 = vpop.permute.xlu0 %1438
  %1440 = vrot.lane.b32.xlu0 %v1315, 108
  %v1441 = vpop.permute.xlu0 %1440
  %1442 = vrot.lane.b32.xlu0 %v1316, 108
  %v1443 = vpop.permute.xlu0 %1442
  %1444 = vrot.lane.b32.xlu0 %v1317, 108
  %v1445 = vpop.permute.xlu0 %1444
  %1446 = vrot.lane.b32.xlu0 %v1318, 108
  %v1447 = vpop.permute.xlu0 %1446
  %v1448 = vsel %vm910, %v1437, %v1439
  %v1449 = vsel %vm910, %v1439, %v1441
  %v1450 = vsel %vm910, %v1441, %v1443
  %v1451 = vsel %vm910, %v1443, %v1445
  %v1452 = vsel %vm910, %v1445, %v1447
  %1458 = vrot.lane.b32.xlu0 %v1313, 107
  %v1459 = vpop.permute.xlu0 %1458
  %1460 = vrot.lane.b32.xlu0 %v1314, 107
  %v1461 = vpop.permute.xlu0 %1460
  %1462 = vrot.lane.b32.xlu0 %v1315, 107
  %v1463 = vpop.permute.xlu0 %1462
  %1464 = vrot.lane.b32.xlu0 %v1316, 107
  %v1465 = vpop.permute.xlu0 %1464
  %1466 = vrot.lane.b32.xlu0 %v1317, 107
  %v1467 = vpop.permute.xlu0 %1466
  %1468 = vrot.lane.b32.xlu0 %v1318, 107
  %v1469 = vpop.permute.xlu0 %1468
  %vm1470 = vcmask 875520
  %v1471 = vsel %vm1470, %v1459, %v1461
  %v1472 = vsel %vm1470, %v1461, %v1463
  %v1473 = vsel %vm1470, %v1463, %v1465
  %v1474 = vsel %vm1470, %v1465, %v1467
  %v1475 = vsel %vm1470, %v1467, %v1469
  %1481 = vrot.lane.b32.xlu0 %v1313, 92
  %v1482 = vpop.permute.xlu0 %1481
  %1483 = vrot.lane.b32.xlu0 %v1314, 92
  %v1484 = vpop.permute.xlu0 %1483
  %1485 = vrot.lane.b32.xlu0 %v1315, 92
  %v1486 = vpop.permute.xlu0 %1485
  %1487 = vrot.lane.b32.xlu0 %v1316, 92
  %v1488 = vpop.permute.xlu0 %1487
  %1489 = vrot.lane.b32.xlu0 %v1317, 92
  %v1490 = vpop.permute.xlu0 %1489
  %1491 = vrot.lane.b32.xlu0 %v1318, 92
  %v1492 = vpop.permute.xlu0 %1491
  %v1493 = vsel %vm933, %v1482, %v1484
  %v1494 = vsel %vm933, %v1484, %v1486
  %v1495 = vsel %vm933, %v1486, %v1488
  %v1496 = vsel %vm933, %v1488, %v1490
  %v1497 = vsel %vm933, %v1490, %v1492
  %1503 = vrot.lane.b32.xlu0 %v1313, 91
  %v1504 = vpop.permute.xlu0 %1503
  %1505 = vrot.lane.b32.xlu0 %v1314, 91
  %v1506 = vpop.permute.xlu0 %1505
  %1507 = vrot.lane.b32.xlu0 %v1315, 91
  %v1508 = vpop.permute.xlu0 %1507
  %1509 = vrot.lane.b32.xlu0 %v1316, 91
  %v1510 = vpop.permute.xlu0 %1509
  %1511 = vrot.lane.b32.xlu0 %v1317, 91
  %v1512 = vpop.permute.xlu0 %1511
  %1513 = vrot.lane.b32.xlu0 %v1318, 91
  %v1514 = vpop.permute.xlu0 %1513
  %v1515 = vsel %vm956, %v1504, %v1506
  %v1516 = vsel %vm956, %v1506, %v1508
  %v1517 = vsel %vm956, %v1508, %v1510
  %v1518 = vsel %vm956, %v1510, %v1512
  %v1519 = vsel %vm956, %v1512, %v1514
  %1525 = vrot.lane.b32.xlu0 %v1313, 90
  %v1526 = vpop.permute.xlu0 %1525
  %1527 = vrot.lane.b32.xlu0 %v1314, 90
  %v1528 = vpop.permute.xlu0 %1527
  %1529 = vrot.lane.b32.xlu0 %v1315, 90
  %v1530 = vpop.permute.xlu0 %1529
  %1531 = vrot.lane.b32.xlu0 %v1316, 90
  %v1532 = vpop.permute.xlu0 %1531
  %1533 = vrot.lane.b32.xlu0 %v1317, 90
  %v1534 = vpop.permute.xlu0 %1533
  %1535 = vrot.lane.b32.xlu0 %v1318, 90
  %v1536 = vpop.permute.xlu0 %1535
  %v1537 = vsel %vm979, %v1526, %v1528
  %v1538 = vsel %vm979, %v1528, %v1530
  %v1539 = vsel %vm979, %v1530, %v1532
  %v1540 = vsel %vm979, %v1532, %v1534
  %v1541 = vsel %vm979, %v1534, %v1536
  %1547 = vrot.lane.b32.xlu0 %v1313, 89
  %v1548 = vpop.permute.xlu0 %1547
  %1549 = vrot.lane.b32.xlu0 %v1314, 89
  %v1550 = vpop.permute.xlu0 %1549
  %1551 = vrot.lane.b32.xlu0 %v1315, 89
  %v1552 = vpop.permute.xlu0 %1551
  %1553 = vrot.lane.b32.xlu0 %v1316, 89
  %v1554 = vpop.permute.xlu0 %1553
  %1555 = vrot.lane.b32.xlu0 %v1317, 89
  %v1556 = vpop.permute.xlu0 %1555
  %1557 = vrot.lane.b32.xlu0 %v1318, 89
  %v1558 = vpop.permute.xlu0 %1557
  %vm1559 = vcmask 728064
  %v1560 = vsel %vm1559, %v1548, %v1550
  %v1561 = vsel %vm1559, %v1550, %v1552
  %v1562 = vsel %vm1559, %v1552, %v1554
  %v1563 = vsel %vm1559, %v1554, %v1556
  %v1564 = vsel %vm1559, %v1556, %v1558
  %1570 = vrot.lane.b32.xlu0 %v1313, 74
  %v1571 = vpop.permute.xlu0 %1570
  %1572 = vrot.lane.b32.xlu0 %v1314, 74
  %v1573 = vpop.permute.xlu0 %1572
  %1574 = vrot.lane.b32.xlu0 %v1315, 74
  %v1575 = vpop.permute.xlu0 %1574
  %1576 = vrot.lane.b32.xlu0 %v1316, 74
  %v1577 = vpop.permute.xlu0 %1576
  %1578 = vrot.lane.b32.xlu0 %v1317, 74
  %v1579 = vpop.permute.xlu0 %1578
  %1580 = vrot.lane.b32.xlu0 %v1318, 74
  %v1581 = vpop.permute.xlu0 %1580
  %vm1582 = vcmask 605184
  %v1583 = vsel %vm1582, %v1571, %v1573
  %v1584 = vsel %vm1582, %v1573, %v1575
  %v1585 = vsel %vm1582, %v1575, %v1577
  %v1586 = vsel %vm1582, %v1577, %v1579
  %v1587 = vsel %vm1582, %v1579, %v1581
  %1593 = vrot.lane.b32.xlu0 %v1313, 73
  %v1594 = vpop.permute.xlu0 %1593
  %1595 = vrot.lane.b32.xlu0 %v1314, 73
  %v1596 = vpop.permute.xlu0 %1595
  %1597 = vrot.lane.b32.xlu0 %v1315, 73
  %v1598 = vpop.permute.xlu0 %1597
  %1599 = vrot.lane.b32.xlu0 %v1316, 73
  %v1600 = vpop.permute.xlu0 %1599
  %1601 = vrot.lane.b32.xlu0 %v1317, 73
  %v1602 = vpop.permute.xlu0 %1601
  %1603 = vrot.lane.b32.xlu0 %v1318, 73
  %v1604 = vpop.permute.xlu0 %1603
  %vm1605 = vcmask 596992
  %v1606 = vsel %vm1605, %v1594, %v1596
  %v1607 = vsel %vm1605, %v1596, %v1598
  %v1608 = vsel %vm1605, %v1598, %v1600
  %v1609 = vsel %vm1605, %v1600, %v1602
  %v1610 = vsel %vm1605, %v1602, %v1604
  %1616 = vrot.lane.b32.xlu0 %v1313, 72
  %v1617 = vpop.permute.xlu0 %1616
  %1618 = vrot.lane.b32.xlu0 %v1314, 72
  %v1619 = vpop.permute.xlu0 %1618
  %1620 = vrot.lane.b32.xlu0 %v1315, 72
  %v1621 = vpop.permute.xlu0 %1620
  %1622 = vrot.lane.b32.xlu0 %v1316, 72
  %v1623 = vpop.permute.xlu0 %1622
  %1624 = vrot.lane.b32.xlu0 %v1317, 72
  %v1625 = vpop.permute.xlu0 %1624
  %1626 = vrot.lane.b32.xlu0 %v1318, 72
  %v1627 = vpop.permute.xlu0 %1626
  %v1628 = vsel %vm994, %v1617, %v1619
  %v1629 = vsel %vm994, %v1619, %v1621
  %v1630 = vsel %vm994, %v1621, %v1623
  %v1631 = vsel %vm994, %v1623, %v1625
  %v1632 = vsel %vm994, %v1625, %v1627
  %1638 = vrot.lane.b32.xlu0 %v1313, 71
  %v1639 = vpop.permute.xlu0 %1638
  %1640 = vrot.lane.b32.xlu0 %v1314, 71
  %v1641 = vpop.permute.xlu0 %1640
  %1642 = vrot.lane.b32.xlu0 %v1315, 71
  %v1643 = vpop.permute.xlu0 %1642
  %1644 = vrot.lane.b32.xlu0 %v1316, 71
  %v1645 = vpop.permute.xlu0 %1644
  %1646 = vrot.lane.b32.xlu0 %v1317, 71
  %v1647 = vpop.permute.xlu0 %1646
  %1648 = vrot.lane.b32.xlu0 %v1318, 71
  %v1649 = vpop.permute.xlu0 %1648
  %vm1650 = vcmask 580608
  %v1651 = vsel %vm1650, %v1639, %v1641
  %v1652 = vsel %vm1650, %v1641, %v1643
  %v1653 = vsel %vm1650, %v1643, %v1645
  %v1654 = vsel %vm1650, %v1645, %v1647
  %v1655 = vsel %vm1650, %v1647, %v1649
  %1661 = vset.pattern.permute.xlu0 7
  %1662 = vperm.xlu0 %1661, %v30
  %v1663 = vpop.permute.xlu0 %1662
  %1665 = vmatprep.subr.mxu0 %v1309
  %1666 = vmatpush1.msra.mxu0 %v1308
  %1667 = vmatprep.subr.mxu0 %v1338
  %1668 = vmatpush1.msra.mxu0 %v1337
  %1669 = vmatprep.subr.mxu0 %v1360
  %1670 = vmatpush1.msra.mxu0 %v1359
  %1671 = vmatprep.subr.mxu0 %v1383
  %1672 = vmatpush1.msra.mxu0 %v1382
  %1673 = vmatprep.subr.mxu0 %v1405
  %1674 = vmatpush1.msra.mxu0 %v1404
  %1675 = vmatprep.subr.mxu0 %v1427
  %1676 = vmatpush1.msra.mxu0 %v1426
  %1677 = vmatprep.subr.mxu0 %v1449
  %1678 = vmatpush1.msra.mxu0 %v1448
  %1679 = vmatprep.subr.mxu0 %v1472
  %1680 = vmatpush1.msra.mxu0 %v1471
  %1681 = vmatprep.subr.mxu0 %v1494
  %1682 = vmatpush1.msra.mxu0 %v1493
  %1683 = vmatprep.subr.mxu0 %v1516
  %1684 = vmatpush1.msra.mxu0 %v1515
  %1685 = vmatprep.subr.mxu0 %v1538
  %1686 = vmatpush1.msra.mxu0 %v1537
  %1687 = vmatprep.subr.mxu0 %v1561
  %1688 = vmatpush1.msra.mxu0 %v1560
  %1689 = vmatprep.subr.mxu0 %v1584
  %1690 = vmatpush1.msra.mxu0 %v1583
  %1691 = vmatprep.subr.mxu0 %v1607
  %1692 = vmatpush1.msra.mxu0 %v1606
  %1693 = vmatprep.subr.mxu0 %v1629
  %1694 = vmatpush1.msra.mxu0 %v1628
  %1695 = vmatprep.subr.mxu0 %v1652
  %1696 = vmatpush1.msra.mxu0 %v1651
  %1697 = vmatprep.subr.mxu0 0.0
  %1698 = vmatpush1.msra.mxu0 0.0
  %1699 = vmatprep.subr.mxu0 0.0
  %1700 = vmatpush1.msra.mxu0 0.0
  %1701 = vmatprep.subr.mxu0 0.0
  %1702 = vmatpush1.msra.mxu0 0.0
  %1703 = vmatprep.subr.mxu0 0.0
  %1704 = vmatpush1.msra.mxu0 0.0
  %1705 = vmatprep.subr.mxu0 0.0
  %1706 = vmatpush1.msra.mxu0 0.0
  %1707 = vmatprep.subr.mxu0 0.0
  %1708 = vmatpush1.msra.mxu0 0.0
  %1709 = vmatprep.subr.mxu0 0.0
  %1710 = vmatpush1.msra.mxu0 0.0
  %1711 = vmatprep.subr.mxu0 0.0
  %1712 = vmatpush1.msra.mxu0 0.0
  %1713 = vmatprep.subr.mxu0 0.0
  %1714 = vmatpush1.msra.mxu0 0.0
  %1715 = vmatprep.subr.mxu0 0.0
  %1716 = vmatpush1.msra.mxu0 0.0
  %1717 = vmatprep.subr.mxu0 0.0
  %1718 = vmatpush1.msra.mxu0 0.0
  %1719 = vmatprep.subr.mxu0 0.0
  %1720 = vmatpush1.msra.mxu0 0.0
  %1721 = vmatprep.subr.mxu0 0.0
  %1722 = vmatpush1.msra.mxu0 0.0
  %1723 = vmatprep.subr.mxu0 0.0
  %1724 = vmatpush1.msra.mxu0 0.0
  %1725 = vmatprep.subr.mxu0 0.0
  %1726 = vmatpush1.msra.mxu0 0.0
  %1727 = vmatprep.subr.mxu0 0.0
  %1728 = vmatpush1.msra.mxu0 0.0
  %1729 = vmatprep.mubr.f32.mxu0 0.0
  %1730 = vmatmul.mubr.f32.gmra.mrb[0].mxu0 %v1307
  %v1731 = vpop.f32.mrb[0].mxu0
  %v1732 = vadd.f32 %v1663, %v1731
  %v1733 = vpop.f32.mrb[0].mxu0
  %v1734 = vadd.f32 %v1663, %v1733
  %1735 = vdwg.mxu0
  %1736 = vmatprep.subr.mxu0 %v1311
  %1737 = vmatpush1.msra.mxu0 %v1310
  %1738 = vmatprep.subr.mxu0 %v1340
  %1739 = vmatpush1.msra.mxu0 %v1339
  %1740 = vmatprep.subr.mxu0 %v1362
  %1741 = vmatpush1.msra.mxu0 %v1361
  %1742 = vmatprep.subr.mxu0 %v1385
  %1743 = vmatpush1.msra.mxu0 %v1384
  %1744 = vmatprep.subr.mxu0 %v1407
  %1745 = vmatpush1.msra.mxu0 %v1406
  %1746 = vmatprep.subr.mxu0 %v1429
  %1747 = vmatpush1.msra.mxu0 %v1428
  %1748 = vmatprep.subr.mxu0 %v1451
  %1749 = vmatpush1.msra.mxu0 %v1450
  %1750 = vmatprep.subr.mxu0 %v1474
  %1751 = vmatpush1.msra.mxu0 %v1473
  %1752 = vmatprep.subr.mxu0 %v1496
  %1753 = vmatpush1.msra.mxu0 %v1495
  %1754 = vmatprep.subr.mxu0 %v1518
  %1755 = vmatpush1.msra.mxu0 %v1517
  %1756 = vmatprep.subr.mxu0 %v1540
  %1757 = vmatpush1.msra.mxu0 %v1539
  %1758 = vmatprep.subr.mxu0 %v1563
  %1759 = vmatpush1.msra.mxu0 %v1562
  %1760 = vmatprep.subr.mxu0 %v1586
  %1761 = vmatpush1.msra.mxu0 %v1585
  %1762 = vmatprep.subr.mxu0 %v1609
  %1763 = vmatpush1.msra.mxu0 %v1608
  %1764 = vmatprep.subr.mxu0 %v1631
  %1765 = vmatpush1.msra.mxu0 %v1630
  %1766 = vmatprep.subr.mxu0 %v1654
  %1767 = vmatpush1.msra.mxu0 %v1653
  %1768 = vmatprep.subr.mxu0 0.0
  %1769 = vmatpush1.msra.mxu0 0.0
  %1770 = vmatprep.subr.mxu0 0.0
  %1771 = vmatpush1.msra.mxu0 0.0
  %1772 = vmatprep.subr.mxu0 0.0
  %1773 = vmatpush1.msra.mxu0 0.0
  %1774 = vmatprep.subr.mxu0 0.0
  %1775 = vmatpush1.msra.mxu0 0.0
  %1776 = vmatprep.subr.mxu0 0.0
  %1777 = vmatpush1.msra.mxu0 0.0
  %1778 = vmatprep.subr.mxu0 0.0
  %1779 = vmatpush1.msra.mxu0 0.0
  %1780 = vmatprep.subr.mxu0 0.0
  %1781 = vmatpush1.msra.mxu0 0.0
  %1782 = vmatprep.subr.mxu0 0.0
  %1783 = vmatpush1.msra.mxu0 0.0
  %1784 = vmatprep.subr.mxu0 0.0
  %1785 = vmatpush1.msra.mxu0 0.0
  %1786 = vmatprep.subr.mxu0 0.0
  %1787 = vmatpush1.msra.mxu0 0.0
  %1788 = vmatprep.subr.mxu0 0.0
  %1789 = vmatpush1.msra.mxu0 0.0
  %1790 = vmatprep.subr.mxu0 0.0
  %1791 = vmatpush1.msra.mxu0 0.0
  %1792 = vmatprep.subr.mxu0 0.0
  %1793 = vmatpush1.msra.mxu0 0.0
  %1794 = vmatprep.subr.mxu0 0.0
  %1795 = vmatpush1.msra.mxu0 0.0
  %1796 = vmatprep.subr.mxu0 0.0
  %1797 = vmatpush1.msra.mxu0 0.0
  %1798 = vmatprep.subr.mxu0 0.0
  %1799 = vmatpush1.msra.mxu0 0.0
  %1800 = vmatprep.mubr.f32.mxu0 0.0
  %1801 = vmatmul.mubr.f32.gmra.mrb[0].mxu0 %v1307
  %v1802 = vpop.f32.mrb[0].mxu0
  %v1803 = vadd.f32 %v1663, %v1802
  %v1804 = vpop.f32.mrb[0].mxu0
  %v1805 = vadd.f32 %v1663, %v1804
  %1806 = vdwg.mxu0
  %1807 = vmatprep.subr.mxu0 0.0
  %1808 = vmatpush1.msra.mxu0 %v1312
  %1809 = vmatprep.subr.mxu0 0.0
  %1810 = vmatpush1.msra.mxu0 %v1341
  %1811 = vmatprep.subr.mxu0 0.0
  %1812 = vmatpush1.msra.mxu0 %v1363
  %1813 = vmatprep.subr.mxu0 0.0
  %1814 = vmatpush1.msra.mxu0 %v1386
  %1815 = vmatprep.subr.mxu0 0.0
  %1816 = vmatpush1.msra.mxu0 %v1408
  %1817 = vmatprep.subr.mxu0 0.0
  %1818 = vmatpush1.msra.mxu0 %v1430
  %1819 = vmatprep.subr.mxu0 0.0
  %1820 = vmatpush1.msra.mxu0 %v1452
  %1821 = vmatprep.subr.mxu0 0.0
  %1822 = vmatpush1.msra.mxu0 %v1475
  %1823 = vmatprep.subr.mxu0 0.0
  %1824 = vmatpush1.msra.mxu0 %v1497
  %1825 = vmatprep.subr.mxu0 0.0
  %1826 = vmatpush1.msra.mxu0 %v1519
  %1827 = vmatprep.subr.mxu0 0.0
  %1828 = vmatpush1.msra.mxu0 %v1541
  %1829 = vmatprep.subr.mxu0 0.0
  %1830 = vmatpush1.msra.mxu0 %v1564
  %1831 = vmatprep.subr.mxu0 0.0
  %1832 = vmatpush1.msra.mxu0 %v1587
  %1833 = vmatprep.subr.mxu0 0.0
  %1834 = vmatpush1.msra.mxu0 %v1610
  %1835 = vmatprep.subr.mxu0 0.0
  %1836 = vmatpush1.msra.mxu0 %v1632
  %1837 = vmatprep.subr.mxu0 0.0
  %1838 = vmatpush1.msra.mxu0 %v1655
  %1839 = vmatprep.subr.mxu0 0.0
  %1840 = vmatpush1.msra.mxu0 0.0
  %1841 = vmatprep.subr.mxu0 0.0
  %1842 = vmatpush1.msra.mxu0 0.0
  %1843 = vmatprep.subr.mxu0 0.0
  %1844 = vmatpush1.msra.mxu0 0.0
  %1845 = vmatprep.subr.mxu0 0.0
  %1846 = vmatpush1.msra.mxu0 0.0
  %1847 = vmatprep.subr.mxu0 0.0
  %1848 = vmatpush1.msra.mxu0 0.0
  %1849 = vmatprep.subr.mxu0 0.0
  %1850 = vmatpush1.msra.mxu0 0.0
  %1851 = vmatprep.subr.mxu0 0.0
  %1852 = vmatpush1.msra.mxu0 0.0
  %1853 = vmatprep.subr.mxu0 0.0
  %1854 = vmatpush1.msra.mxu0 0.0
  %1855 = vmatprep.subr.mxu0 0.0
  %1856 = vmatpush1.msra.mxu0 0.0
  %1857 = vmatprep.subr.mxu0 0.0
  %1858 = vmatpush1.msra.mxu0 0.0
  %1859 = vmatprep.subr.mxu0 0.0
  %1860 = vmatpush1.msra.mxu0 0.0
  %1861 = vmatprep.subr.mxu0 0.0
  %1862 = vmatpush1.msra.mxu0 0.0
  %1863 = vmatprep.subr.mxu0 0.0
  %1864 = vmatpush1.msra.mxu0 0.0
  %1865 = vmatprep.subr.mxu0 0.0
  %1866 = vmatpush1.msra.mxu0 0.0
  %1867 = vmatprep.subr.mxu0 0.0
  %1868 = vmatpush1.msra.mxu0 0.0
  %1869 = vmatprep.subr.mxu0 0.0
  %1870 = vmatpush1.msra.mxu0 0.0
  %1871 = vmatprep.mubr.f32.mxu0 0.0
  %1872 = vmatmul.mubr.f32.gmra.mrb[0].mxu0 %v1307
  %v1873 = vpop.f32.mrb[0].mxu0
  %v1874 = vadd.f32 %v1663, %v1873
  %v1875 = vpop.f32.mrb[0].mxu0
  %1876 = vdwg.mxu0
  %1877 = vst [vmem:[%s8] sm:$0xff] %v1732
  %1878 = vst [vmem:[%s8 + $0x8] sm:$0xff] %v1734
  %1879 = vst [vmem:[%s8 + $0x10] sm:$0xff] %v1803
  %1880 = vst [vmem:[%s8 + $0x18] sm:$0xff] %v1805
  %1881 = vst [vmem:[%s8 + $0x20] sm:$0xff] %v1874
  // Predicated region
  $region34: #{block_forward.1} parent=0 // pred_check
    _
  $region35: #{block_forward.1} parent=0 // pred_check_branch
    %1883 = sbr.rel (0) target = $region37
  $region36: #{block_forward.1} parent=0 // pred_region
    _
  $region37: #{block_forward.1} parent=0 // pred_fallthru
    _
  // Predicated region
  $region38: #{block_forward.1} parent=0 // pred_check
    _
  $region39: #{block_forward.1} parent=0 // pred_check_branch
    %1885 = sbr.rel (0) target = $region41
  $region40: #{block_forward.1} parent=0 // pred_region
    _
  $region41: #{block_forward.1} parent=0 // pred_fallthru
    _

</llo_original>
